<compile_context>
chip_gen: v5e
topology: v5e:2x2
jax: 0.10.0
libtpu: 0.0.40
codegen_flags: <defaults>
</compile_context>

<pallas_src>
import math
import functools

import jax
import jax.numpy as jnp
from jax import lax
from jax.experimental import pallas as pl
from jax.experimental.pallas import tpu as pltpu


def _layer_norm(x, gamma, beta, eps=1e-5):
    mean = jnp.mean(x, axis=-1, keepdims=True)
    var = jnp.mean((x - mean) ** 2, axis=-1, keepdims=True)  # biased, like nn.LayerNorm
    return (x - mean) * jax.lax.rsqrt(var + eps) * gamma + beta


def encoder_layer_kernel(xq_ref, xf_ref,
                         wq_ref, bq_ref, wk_ref, bk_ref, wv_ref, bv_ref,
                         wo_ref, bo_ref,
                         ln1w_ref, ln1b_ref,
                         w1_ref, b1_ref, w2_ref, b2_ref,
                         ln2w_ref, ln2b_ref,
                         out_ref,
                         k_scr, v_scr, ctx_scr,
                         *, heads, compute_dtype):
    cd = compute_dtype
    q_idx = pl.program_id(1)

    # ---- K/V projections: once per batch element, kept resident in VMEM scratch.
    # (q grid axis is "arbitrary"; scratch persists across grid steps.)
    @pl.when(q_idx == 0)
    def _():
        xf = xf_ref[...]                                   # (S, E) bf16 full sequence
        k = jnp.dot(xf, wk_ref[...], preferred_element_type=jnp.float32) + bk_ref[...]
        v = jnp.dot(xf, wv_ref[...], preferred_element_type=jnp.float32) + bv_ref[...]
        k_scr[...] = k.astype(cd)
        v_scr[...] = v.astype(cd)

    xq = xq_ref[...]                                       # (Tq, E) f32: queries + residual rows
    Tq, E = xq.shape
    Dh = E // heads

    # Q projection (Wq/bq are pre-scaled by 1/sqrt(Dh) in the wrapper).
    q = (jnp.dot(xq.astype(cd), wq_ref[...], preferred_element_type=jnp.float32)
         + bq_ref[...]).astype(cd)                         # (Tq, E) bf16

    # ---- Per-head attention with static 2-D slices; context written into a
    # (Tq, E) buffer so the output projection is a single full-K matmul.
    # TODO(synk): for large `heads`, switch to lax.fori_loop / a head grid axis
    # and lane-align head groups (pad Dh to 128 or pair heads) for MXU fill.
    # TODO(synk): for very long S, switch to online-softmax (flash) with a KV
    # grid axis and m/l/acc scratch instead of materializing (Tq, S) scores.
    for h in range(heads):
        lo, hi = h * Dh, (h + 1) * Dh
        qh = q[:, lo:hi]                                   # (Tq, Dh) bf16
        kh = k_scr[:, lo:hi]                               # (S,  Dh) bf16
        vh = v_scr[:, lo:hi]                               # (S,  Dh) bf16
        s = lax.dot_general(qh, kh, (((1,), (1,)), ((), ())),
                            preferred_element_type=jnp.float32)   # (Tq, S) f32
        s = s - jnp.max(s, axis=-1, keepdims=True)
        p = jnp.exp(s)
        denom = jnp.sum(p, axis=-1, keepdims=True)         # (Tq, 1) f32
        pv = jnp.dot(p.astype(cd), vh, preferred_element_type=jnp.float32)  # (Tq, Dh)
        ctx_scr[:, lo:hi] = (pv / denom).astype(cd)        # exact normalization, tiny cost

    # Fused output projection over the full K dimension.
    attn = jnp.dot(ctx_scr[...], wo_ref[...],
                   preferred_element_type=jnp.float32) + bo_ref[...]

    # residual + norm1 (f32)
    x1 = _layer_norm(attn + xq, ln1w_ref[...], ln1b_ref[...])

    # feed-forward: bf16 matmul inputs, f32 accumulate; relu in f32
    h1 = jnp.dot(x1.astype(cd), w1_ref[...], preferred_element_type=jnp.float32) + b1_ref[...]
    h1 = jnp.maximum(h1, 0.0)
    ffn = jnp.dot(h1.astype(cd), w2_ref[...], preferred_element_type=jnp.float32) + b2_ref[...]

    # residual + norm2 (f32)
    out_ref[...] = _layer_norm(x1 + ffn, ln2w_ref[...], ln2b_ref[...])


def encoder_layer(x, params, *, heads, compute_dtype=jnp.bfloat16, q_block=None):
    """x: (B, S, E) float32.  Returns (B, S, E) float32."""
    B, S, E = x.shape
    M = params["w1"].shape[1]
    assert E % heads == 0, "embed_size must be divisible by heads"
    Dh = E // heads
    scale = 1.0 / math.sqrt(Dh)
    # TODO(synk): production shapes should keep E % 128 == 0 (lane-dense stores);
    # the small test shape E=32 underfills vregs/lanes but remains correct.

    # Generation-aware VMEM budget (v5e/v6e: 128 MiB, v7x: 64 MiB physical).
    try:
        vmem_cap = pltpu.get_tpu_info().vmem_capacity_bytes
    except Exception:
        vmem_cap = 64 * 1024 * 1024   # conservative (v7x-sized) default for the limit only
    vmem_limit = min(int(vmem_cap * 3 // 4), 100 * 1024 * 1024)

    if q_block is None:
        q_cap = 512 if vmem_limit >= 64 * 1024 * 1024 else 256
        if S <= q_cap:
            q_block = S
        else:
            q_block = next((t for t in (512, 256, 128, 64, 32, 16, 8)
                            if t <= q_cap and S % t == 0), S)
    assert S % q_block == 0, "S must be divisible by the query tile"
    assert q_block == S or q_block % 8 == 0, "query tile must be (8,.)-aligned"
    n_q = S // q_block

    cd = compute_dtype
    # Fold the 1/sqrt(Dh) softmax scale into the Q projection (free at runtime).
    wq_s = (params["wq"] * scale).astype(cd)
    bq_s = params["bq"] * scale

    # Weights / biases: whole-array resident in VMEM, single-buffered (no
    # double-buffered fallback that could blow the v7x budget).
    wspec = pl.BlockSpec(memory_space=pltpu.MemorySpace.VMEM)
    # TODO(synk): for very large map_dim on v7x, tile w1/w2 along M instead of
    # keeping them fully resident.

    in_specs = [
        # query-tile view of x (queries, residuals, FFN rows) -- batch dim squeezed
        pl.BlockSpec((None, q_block, E), lambda b, q: (b, q, 0)),
        # full-sequence bf16 view of x (K/V source); block index constant along q
        # so it is DMA'd once per batch element.
        pl.BlockSpec((None, S, E), lambda b, q: (b, 0, 0)),
        wspec, wspec,      # wq, bq
        wspec, wspec,      # wk, bk
        wspec, wspec,      # wv, bv
        wspec, wspec,      # wo, bo
        wspec, wspec,      # ln1 gamma, beta
        wspec, wspec,      # w1, b1
        wspec, wspec,      # w2, b2
        wspec, wspec,      # ln2 gamma, beta
    ]

    kernel = functools.partial(encoder_layer_kernel, heads=heads, compute_dtype=cd)

    return pl.pallas_call(
        kernel,
        out_shape=jax.ShapeDtypeStruct((B, S, E), jnp.float32),
        grid=(B, n_q),
        in_specs=in_specs,
        out_specs=pl.BlockSpec((None, q_block, E), lambda b, q: (b, q, 0)),
        scratch_shapes=[
            pltpu.VMEM((S, E), cd),         # K projection (computed at q == 0)
            pltpu.VMEM((S, E), cd),         # V projection (computed at q == 0)
            pltpu.VMEM((q_block, E), cd),   # per-head context, fed to one Wo matmul
        ],
        compiler_params=pltpu.CompilerParams(
            # q axis must be "arbitrary": K/V scratch written at q==0 is reused
            # by later q steps of the same batch element.
            dimension_semantics=("parallel", "arbitrary"),
            vmem_limit_bytes=vmem_limit),
    )(
        x, x.astype(cd),
        wq_s, bq_s,
        params["wk"].astype(cd), params["bk"],
        params["wv"].astype(cd), params["bv"],
        params["wo"].astype(cd), params["bo"],
        params["ln1_w"], params["ln1_b"],
        params["w1"].astype(cd), params["b1"],
        params["w2"].astype(cd), params["b2"],
        params["ln2_w"], params["ln2_b"],
    )


def encoder_layer_ref(x, params, *, heads, compute_dtype=jnp.float32):
    """Pure-JAX reference mirroring the PyTorch forward.

    compute_dtype=float32 reproduces the PyTorch module exactly; bfloat16 mirrors
    the kernel's precision policy (bf16 MXU inputs, f32 accumulation)."""
    cd = compute_dtype
    B, S, E = x.shape
    Dh = E // heads

    def mm(a, w):
        return jnp.einsum('...i,io->...o', a.astype(cd), w.astype(cd),
                          preferred_element_type=jnp.float32)

    q = mm(x, params["wq"]) + params["bq"]
    k = mm(x, params["wk"]) + params["bk"]
    v = mm(x, params["wv"]) + params["bv"]
    qh = q.reshape(B, S, heads, Dh)
    kh = k.reshape(B, S, heads, Dh)
    vh = v.reshape(B, S, heads, Dh)
    scores = jnp.einsum('bqhd,bkhd->bhqk', qh.astype(cd), kh.astype(cd),
                        preferred_element_type=jnp.float32) / math.sqrt(Dh)
    p = jax.nn.softmax(scores, axis=-1)
    ctx = jnp.einsum('bhqk,bkhd->bqhd', p.astype(cd), vh.astype(cd),
                     preferred_element_type=jnp.float32).reshape(B, S, E)
    attn = mm(ctx, params["wo"]) + params["bo"]
    x1 = _layer_norm(attn + x, params["ln1_w"], params["ln1_b"])
    h = jnp.maximum(mm(x1, params["w1"]) + params["b1"], 0.0)
    ffn = mm(h, params["w2"]) + params["b2"]
    return _layer_norm(x1 + ffn, params["ln2_w"], params["ln2_b"])


def make_params(key, embed_size, map_dim):
    ks = jax.random.split(key, 10)
    s_e = 1.0 / math.sqrt(embed_size)
    s_m = 1.0 / math.sqrt(map_dim)
    return {
        "wq": jax.random.uniform(ks[0], (embed_size, embed_size), jnp.float32, -s_e, s_e),
        "bq": jax.random.uniform(ks[1], (1, embed_size), jnp.float32, -s_e, s_e),
        "wk": jax.random.uniform(ks[2], (embed_size, embed_size), jnp.float32, -s_e, s_e),
        "bk": jax.random.uniform(ks[3], (1, embed_size), jnp.float32, -s_e, s_e),
        "wv": jax.random.uniform(ks[4], (embed_size, embed_size), jnp.float32, -s_e, s_e),
        "bv": jax.random.uniform(ks[5], (1, embed_size), jnp.float32, -s_e, s_e),
        "wo": jax.random.uniform(ks[6], (embed_size, embed_size), jnp.float32, -s_e, s_e),
        "bo": jax.random.uniform(ks[7], (1, embed_size), jnp.float32, -s_e, s_e),
        "ln1_w": jnp.ones((1, embed_size), jnp.float32),
        "ln1_b": jnp.zeros((1, embed_size), jnp.float32),
        "w1": jax.random.uniform(ks[8], (embed_size, map_dim), jnp.float32, -s_e, s_e),
        "b1": jnp.zeros((1, map_dim), jnp.float32),
        "w2": jax.random.uniform(ks[9], (map_dim, embed_size), jnp.float32, -s_m, s_m),
        "b2": jnp.zeros((1, embed_size), jnp.float32),
        "ln2_w": jnp.ones((1, embed_size), jnp.float32),
        "ln2_b": jnp.zeros((1, embed_size), jnp.float32),
    }


if __name__ == "__main__":
    B, S, E, H, M = 2, 8, 32, 4, 64   # batch, seq, embed_size, heads, map_dim

    key = jax.random.PRNGKey(0)
    k_x, k_p = jax.random.split(key)
    x = jax.random.normal(k_x, (B, S, E), dtype=jnp.float32)
    params = make_params(k_p, E, M)

    out = jax.block_until_ready(encoder_layer(x, params, heads=H))
    assert out.shape == (B, S, E)

    # Check against a reference with the same precision policy as the kernel
    # (bf16 MXU inputs, f32 accumulation, f32 softmax/LayerNorm).
    ref_bf16 = encoder_layer_ref(x, params, heads=H, compute_dtype=jnp.bfloat16)
    assert jnp.allclose(out, ref_bf16, atol=2e-2, rtol=2e-2), "mismatch vs bf16-policy reference"

    # Looser check against the exact f32 PyTorch semantics.
    ref_f32 = encoder_layer_ref(x, params, heads=H, compute_dtype=jnp.float32)
    assert jnp.allclose(out, ref_f32, atol=6e-2, rtol=6e-2), "mismatch vs f32 reference"

    print("KERNEL_OK")
</pallas_src>

<mosaic_0001>
module attributes {stable_mosaic.version = 11 : i64} {
  func.func @encoder_layer_kernel(%arg0: i32, %arg1: i32, %arg2: memref<1x8x32xf32, #tpu.memory_space<vmem>>, %arg3: memref<1x8x32xbf16, #tpu.memory_space<vmem>>, %arg4: memref<32x32xbf16, #tpu.memory_space<vmem>>, %arg5: memref<1x32xf32, #tpu.memory_space<vmem>>, %arg6: memref<32x32xbf16, #tpu.memory_space<vmem>>, %arg7: memref<1x32xf32, #tpu.memory_space<vmem>>, %arg8: memref<32x32xbf16, #tpu.memory_space<vmem>>, %arg9: memref<1x32xf32, #tpu.memory_space<vmem>>, %arg10: memref<32x32xbf16, #tpu.memory_space<vmem>>, %arg11: memref<1x32xf32, #tpu.memory_space<vmem>>, %arg12: memref<1x32xf32, #tpu.memory_space<vmem>>, %arg13: memref<1x32xf32, #tpu.memory_space<vmem>>, %arg14: memref<32x64xbf16, #tpu.memory_space<vmem>>, %arg15: memref<1x64xf32, #tpu.memory_space<vmem>>, %arg16: memref<64x32xbf16, #tpu.memory_space<vmem>>, %arg17: memref<1x32xf32, #tpu.memory_space<vmem>>, %arg18: memref<1x32xf32, #tpu.memory_space<vmem>>, %arg19: memref<1x32xf32, #tpu.memory_space<vmem>>, %arg20: memref<1x8x32xf32, #tpu.memory_space<vmem>>, %arg21: memref<8x32xbf16, #tpu.memory_space<vmem>>, %arg22: memref<8x32xbf16, #tpu.memory_space<vmem>>, %arg23: memref<8x32xbf16, #tpu.memory_space<vmem>>) attributes {dimension_semantics = [#tpu.dimension_semantics<parallel>, #tpu.dimension_semantics<arbitrary>], iteration_bounds = array<i64: 2, 1>, scalar_prefetch = 0 : i64, scratch_operands = 3 : i64, tpu.core_type = #tpu.core_type<tc>, window_params = [{transform_indices = @transform_0, window_bounds = array<i64: 1, 8, 32>}, {transform_indices = @transform_1, window_bounds = array<i64: 1, 8, 32>}, {pipeline_mode = #tpu.pipeline_mode<synchronous>, transform_indices = @transform_2, window_bounds = array<i64: 32, 32>}, {pipeline_mode = #tpu.pipeline_mode<synchronous>, transform_indices = @transform_3, window_bounds = array<i64: 1, 32>}, {pipeline_mode = #tpu.pipeline_mode<synchronous>, transform_indices = @transform_4, window_bounds = array<i64: 32, 32>}, {pipeline_mode = #tpu.pipeline_mode<synchronous>, transform_indices = @transform_5, window_bounds = array<i64: 1, 32>}, {pipeline_mode = #tpu.pipeline_mode<synchronous>, transform_indices = @transform_6, window_bounds = array<i64: 32, 32>}, {pipeline_mode = #tpu.pipeline_mode<synchronous>, transform_indices = @transform_7, window_bounds = array<i64: 1, 32>}, {pipeline_mode = #tpu.pipeline_mode<synchronous>, transform_indices = @transform_8, window_bounds = array<i64: 32, 32>}, {pipeline_mode = #tpu.pipeline_mode<synchronous>, transform_indices = @transform_9, window_bounds = array<i64: 1, 32>}, {pipeline_mode = #tpu.pipeline_mode<synchronous>, transform_indices = @transform_10, window_bounds = array<i64: 1, 32>}, {pipeline_mode = #tpu.pipeline_mode<synchronous>, transform_indices = @transform_11, window_bounds = array<i64: 1, 32>}, {pipeline_mode = #tpu.pipeline_mode<synchronous>, transform_indices = @transform_12, window_bounds = array<i64: 32, 64>}, {pipeline_mode = #tpu.pipeline_mode<synchronous>, transform_indices = @transform_13, window_bounds = array<i64: 1, 64>}, {pipeline_mode = #tpu.pipeline_mode<synchronous>, transform_indices = @transform_14, window_bounds = array<i64: 64, 32>}, {pipeline_mode = #tpu.pipeline_mode<synchronous>, transform_indices = @transform_15, window_bounds = array<i64: 1, 32>}, {pipeline_mode = #tpu.pipeline_mode<synchronous>, transform_indices = @transform_16, window_bounds = array<i64: 1, 32>}, {pipeline_mode = #tpu.pipeline_mode<synchronous>, transform_indices = @transform_17, window_bounds = array<i64: 1, 32>}, {transform_indices = @transform_18, window_bounds = array<i64: 1, 8, 32>}]} {
    %c0_i32 = arith.constant 0 : i32
    %0 = arith.cmpi eq, %arg1, %c0_i32 : i32
    %1 = arith.extui %0 : i1 to i32
    %c0_i32_0 = arith.constant 0 : i32
    %2 = arith.cmpi ne, %1, %c0_i32_0 : i32
    scf.if %2 {
      %c0_83 = arith.constant 0 : index
      %c0_84 = arith.constant 0 : index
      %c0_85 = arith.constant 0 : index
      %153 = vector.load %arg3[%c0_83, %c0_84, %c0_85] : memref<1x8x32xbf16, #tpu.memory_space<vmem>>, vector<1x8x32xbf16>
      %154 = vector.shape_cast %153 : vector<1x8x32xbf16> to vector<8x32xbf16>
      %c0_86 = arith.constant 0 : index
      %c0_87 = arith.constant 0 : index
      %155 = vector.load %arg6[%c0_86, %c0_87] : memref<32x32xbf16, #tpu.memory_space<vmem>>, vector<32x32xbf16>
      %cst_88 = arith.constant dense<0.000000e+00> : vector<8x32xf32>
      %156 = tpu.matmul %154, %155, %cst_88 {dimension_numbers = #tpu.dot_dimension_numbers<[1], [0], [0], [1], [0, 0, 1, 1], [], []>} : vector<8x32xbf16>, vector<32x32xbf16>, vector<8x32xf32> -> vector<8x32xf32>
      %c0_89 = arith.constant 0 : index
      %c0_90 = arith.constant 0 : index
      %157 = vector.load %arg7[%c0_89, %c0_90] : memref<1x32xf32, #tpu.memory_space<vmem>>, vector<1x32xf32>
      %158 = vector.broadcast %157 : vector<1x32xf32> to vector<8x32xf32>
      %159 = arith.addf %156, %158 : vector<8x32xf32>
      %c0_91 = arith.constant 0 : index
      %c0_92 = arith.constant 0 : index
      %160 = vector.load %arg8[%c0_91, %c0_92] : memref<32x32xbf16, #tpu.memory_space<vmem>>, vector<32x32xbf16>
      %cst_93 = arith.constant dense<0.000000e+00> : vector<8x32xf32>
      %161 = tpu.matmul %154, %160, %cst_93 {dimension_numbers = #tpu.dot_dimension_numbers<[1], [0], [0], [1], [0, 0, 1, 1], [], []>} : vector<8x32xbf16>, vector<32x32xbf16>, vector<8x32xf32> -> vector<8x32xf32>
      %c0_94 = arith.constant 0 : index
      %c0_95 = arith.constant 0 : index
      %162 = vector.load %arg9[%c0_94, %c0_95] : memref<1x32xf32, #tpu.memory_space<vmem>>, vector<1x32xf32>
      %163 = vector.broadcast %162 : vector<1x32xf32> to vector<8x32xf32>
      %164 = arith.addf %161, %163 : vector<8x32xf32>
      %165 = arith.truncf %159 : vector<8x32xf32> to vector<8x32xbf16>
      %c0_96 = arith.constant 0 : index
      %c0_97 = arith.constant 0 : index
      %166 = vector.load %arg21[%c0_96, %c0_97] : memref<8x32xbf16, #tpu.memory_space<vmem>>, vector<8x32xbf16>
      tpu.vector_store %arg21[%c0_96, %c0_97], %165 {strides = array<i32>} : memref<8x32xbf16, #tpu.memory_space<vmem>>, vector<8x32xbf16>,
      %167 = arith.truncf %164 : vector<8x32xf32> to vector<8x32xbf16>
      %c0_98 = arith.constant 0 : index
      %c0_99 = arith.constant 0 : index
      %168 = vector.load %arg22[%c0_98, %c0_99] : memref<8x32xbf16, #tpu.memory_space<vmem>>, vector<8x32xbf16>
      tpu.vector_store %arg22[%c0_98, %c0_99], %167 {strides = array<i32>} : memref<8x32xbf16, #tpu.memory_space<vmem>>, vector<8x32xbf16>,
    } else {
    }
    %c0 = arith.constant 0 : index
    %c0_1 = arith.constant 0 : index
    %c0_2 = arith.constant 0 : index
    %3 = vector.load %arg2[%c0, %c0_1, %c0_2] : memref<1x8x32xf32, #tpu.memory_space<vmem>>, vector<1x8x32xf32>
    %4 = vector.shape_cast %3 : vector<1x8x32xf32> to vector<8x32xf32>
    %5 = arith.truncf %4 : vector<8x32xf32> to vector<8x32xbf16>
    %c0_3 = arith.constant 0 : index
    %c0_4 = arith.constant 0 : index
    %6 = vector.load %arg4[%c0_3, %c0_4] : memref<32x32xbf16, #tpu.memory_space<vmem>>, vector<32x32xbf16>
    %cst = arith.constant dense<0.000000e+00> : vector<8x32xf32>
    %7 = tpu.matmul %5, %6, %cst {dimension_numbers = #tpu.dot_dimension_numbers<[1], [0], [0], [1], [0, 0, 1, 1], [], []>} : vector<8x32xbf16>, vector<32x32xbf16>, vector<8x32xf32> -> vector<8x32xf32>
    %c0_5 = arith.constant 0 : index
    %c0_6 = arith.constant 0 : index
    %8 = vector.load %arg5[%c0_5, %c0_6] : memref<1x32xf32, #tpu.memory_space<vmem>>, vector<1x32xf32>
    %9 = vector.broadcast %8 : vector<1x32xf32> to vector<8x32xf32>
    %10 = arith.addf %7, %9 : vector<8x32xf32>
    %11 = arith.truncf %10 : vector<8x32xf32> to vector<8x32xbf16>
    %12 = vector.extract_strided_slice %11 {offsets = [0, 0], sizes = [8, 8], strides = [1, 1]} : vector<8x32xbf16> to vector<8x8xbf16>
    %c0_7 = arith.constant 0 : index
    %c0_8 = arith.constant 0 : index
    %13 = vector.load %arg21[%c0_7, %c0_8] : memref<8x32xbf16, #tpu.memory_space<vmem>>, vector<8x8xbf16>
    %c0_9 = arith.constant 0 : index
    %c0_10 = arith.constant 0 : index
    %14 = vector.load %arg22[%c0_9, %c0_10] : memref<8x32xbf16, #tpu.memory_space<vmem>>, vector<8x8xbf16>
    %cst_11 = arith.constant dense<0.000000e+00> : vector<8x8xf32>
    %15 = tpu.matmul %12, %13, %cst_11 {dimension_numbers = #tpu.dot_dimension_numbers<[1], [1], [0], [0], [0, 0, 1, 0], [], []>} : vector<8x8xbf16>, vector<8x8xbf16>, vector<8x8xf32> -> vector<8x8xf32>
    %cst_12 = arith.constant dense<0xFF800000> : vector<8xf32>
    %16 = vector.multi_reduction <maximumf>, %15, %cst_12 [1] : vector<8x8xf32> to vector<8xf32>
    %17 = vector.shape_cast %16 : vector<8xf32> to vector<8x1xf32>
    %18 = vector.broadcast %17 : vector<8x1xf32> to vector<8x8xf32>
    %19 = arith.subf %15, %18 : vector<8x8xf32>
    %20 = math.exp %19 : vector<8x8xf32>
    %cst_13 = arith.constant dense<0.000000e+00> : vector<8xf32>
    %21 = vector.multi_reduction <add>, %20, %cst_13 [1] : vector<8x8xf32> to vector<8xf32>
    %22 = vector.shape_cast %21 : vector<8xf32> to vector<8x1xf32>
    %23 = arith.truncf %20 : vector<8x8xf32> to vector<8x8xbf16>
    %cst_14 = arith.constant dense<0.000000e+00> : vector<8x8xf32>
    %24 = tpu.matmul %23, %14, %cst_14 {dimension_numbers = #tpu.dot_dimension_numbers<[1], [0], [0], [1], [0, 0, 1, 1], [], []>} : vector<8x8xbf16>, vector<8x8xbf16>, vector<8x8xf32> -> vector<8x8xf32>
    %25 = vector.broadcast %22 : vector<8x1xf32> to vector<8x8xf32>
    %26 = arith.divf %24, %25 : vector<8x8xf32>
    %27 = arith.truncf %26 : vector<8x8xf32> to vector<8x8xbf16>
    %c0_15 = arith.constant 0 : index
    %c0_16 = arith.constant 0 : index
    %28 = vector.load %arg23[%c0_15, %c0_16] : memref<8x32xbf16, #tpu.memory_space<vmem>>, vector<8x8xbf16>
    tpu.vector_store %arg23[%c0_15, %c0_16], %27 {strides = array<i32>} : memref<8x32xbf16, #tpu.memory_space<vmem>>, vector<8x8xbf16>,
    %29 = vector.extract_strided_slice %11 {offsets = [0, 8], sizes = [8, 8], strides = [1, 1]} : vector<8x32xbf16> to vector<8x8xbf16>
    %c0_17 = arith.constant 0 : index
    %c8 = arith.constant 8 : index
    %30 = vector.load %arg21[%c0_17, %c8] : memref<8x32xbf16, #tpu.memory_space<vmem>>, vector<8x8xbf16>
    %c0_18 = arith.constant 0 : index
    %c8_19 = arith.constant 8 : index
    %31 = vector.load %arg22[%c0_18, %c8_19] : memref<8x32xbf16, #tpu.memory_space<vmem>>, vector<8x8xbf16>
    %cst_20 = arith.constant dense<0.000000e+00> : vector<8x8xf32>
    %32 = tpu.matmul %29, %30, %cst_20 {dimension_numbers = #tpu.dot_dimension_numbers<[1], [1], [0], [0], [0, 0, 1, 0], [], []>} : vector<8x8xbf16>, vector<8x8xbf16>, vector<8x8xf32> -> vector<8x8xf32>
    %cst_21 = arith.constant dense<0xFF800000> : vector<8xf32>
    %33 = vector.multi_reduction <maximumf>, %32, %cst_21 [1] : vector<8x8xf32> to vector<8xf32>
    %34 = vector.shape_cast %33 : vector<8xf32> to vector<8x1xf32>
    %35 = vector.broadcast %34 : vector<8x1xf32> to vector<8x8xf32>
    %36 = arith.subf %32, %35 : vector<8x8xf32>
    %37 = math.exp %36 : vector<8x8xf32>
    %cst_22 = arith.constant dense<0.000000e+00> : vector<8xf32>
    %38 = vector.multi_reduction <add>, %37, %cst_22 [1] : vector<8x8xf32> to vector<8xf32>
    %39 = vector.shape_cast %38 : vector<8xf32> to vector<8x1xf32>
    %40 = arith.truncf %37 : vector<8x8xf32> to vector<8x8xbf16>
    %cst_23 = arith.constant dense<0.000000e+00> : vector<8x8xf32>
    %41 = tpu.matmul %40, %31, %cst_23 {dimension_numbers = #tpu.dot_dimension_numbers<[1], [0], [0], [1], [0, 0, 1, 1], [], []>} : vector<8x8xbf16>, vector<8x8xbf16>, vector<8x8xf32> -> vector<8x8xf32>
    %42 = vector.broadcast %39 : vector<8x1xf32> to vector<8x8xf32>
    %43 = arith.divf %41, %42 : vector<8x8xf32>
    %44 = arith.truncf %43 : vector<8x8xf32> to vector<8x8xbf16>
    %c0_24 = arith.constant 0 : index
    %c8_25 = arith.constant 8 : index
    %45 = vector.load %arg23[%c0_24, %c8_25] : memref<8x32xbf16, #tpu.memory_space<vmem>>, vector<8x8xbf16>
    tpu.vector_store %arg23[%c0_24, %c8_25], %44 {strides = array<i32>} : memref<8x32xbf16, #tpu.memory_space<vmem>>, vector<8x8xbf16>,
    %46 = vector.extract_strided_slice %11 {offsets = [0, 16], sizes = [8, 8], strides = [1, 1]} : vector<8x32xbf16> to vector<8x8xbf16>
    %c0_26 = arith.constant 0 : index
    %c16 = arith.constant 16 : index
    %47 = vector.load %arg21[%c0_26, %c16] : memref<8x32xbf16, #tpu.memory_space<vmem>>, vector<8x8xbf16>
    %c0_27 = arith.constant 0 : index
    %c16_28 = arith.constant 16 : index
    %48 = vector.load %arg22[%c0_27, %c16_28] : memref<8x32xbf16, #tpu.memory_space<vmem>>, vector<8x8xbf16>
    %cst_29 = arith.constant dense<0.000000e+00> : vector<8x8xf32>
    %49 = tpu.matmul %46, %47, %cst_29 {dimension_numbers = #tpu.dot_dimension_numbers<[1], [1], [0], [0], [0, 0, 1, 0], [], []>} : vector<8x8xbf16>, vector<8x8xbf16>, vector<8x8xf32> -> vector<8x8xf32>
    %cst_30 = arith.constant dense<0xFF800000> : vector<8xf32>
    %50 = vector.multi_reduction <maximumf>, %49, %cst_30 [1] : vector<8x8xf32> to vector<8xf32>
    %51 = vector.shape_cast %50 : vector<8xf32> to vector<8x1xf32>
    %52 = vector.broadcast %51 : vector<8x1xf32> to vector<8x8xf32>
    %53 = arith.subf %49, %52 : vector<8x8xf32>
    %54 = math.exp %53 : vector<8x8xf32>
    %cst_31 = arith.constant dense<0.000000e+00> : vector<8xf32>
    %55 = vector.multi_reduction <add>, %54, %cst_31 [1] : vector<8x8xf32> to vector<8xf32>
    %56 = vector.shape_cast %55 : vector<8xf32> to vector<8x1xf32>
    %57 = arith.truncf %54 : vector<8x8xf32> to vector<8x8xbf16>
    %cst_32 = arith.constant dense<0.000000e+00> : vector<8x8xf32>
    %58 = tpu.matmul %57, %48, %cst_32 {dimension_numbers = #tpu.dot_dimension_numbers<[1], [0], [0], [1], [0, 0, 1, 1], [], []>} : vector<8x8xbf16>, vector<8x8xbf16>, vector<8x8xf32> -> vector<8x8xf32>
    %59 = vector.broadcast %56 : vector<8x1xf32> to vector<8x8xf32>
    %60 = arith.divf %58, %59 : vector<8x8xf32>
    %61 = arith.truncf %60 : vector<8x8xf32> to vector<8x8xbf16>
    %c0_33 = arith.constant 0 : index
    %c16_34 = arith.constant 16 : index
    %62 = vector.load %arg23[%c0_33, %c16_34] : memref<8x32xbf16, #tpu.memory_space<vmem>>, vector<8x8xbf16>
    tpu.vector_store %arg23[%c0_33, %c16_34], %61 {strides = array<i32>} : memref<8x32xbf16, #tpu.memory_space<vmem>>, vector<8x8xbf16>,
    %63 = vector.extract_strided_slice %11 {offsets = [0, 24], sizes = [8, 8], strides = [1, 1]} : vector<8x32xbf16> to vector<8x8xbf16>
    %c0_35 = arith.constant 0 : index
    %c24 = arith.constant 24 : index
    %64 = vector.load %arg21[%c0_35, %c24] : memref<8x32xbf16, #tpu.memory_space<vmem>>, vector<8x8xbf16>
    %c0_36 = arith.constant 0 : index
    %c24_37 = arith.constant 24 : index
    %65 = vector.load %arg22[%c0_36, %c24_37] : memref<8x32xbf16, #tpu.memory_space<vmem>>, vector<8x8xbf16>
    %cst_38 = arith.constant dense<0.000000e+00> : vector<8x8xf32>
    %66 = tpu.matmul %63, %64, %cst_38 {dimension_numbers = #tpu.dot_dimension_numbers<[1], [1], [0], [0], [0, 0, 1, 0], [], []>} : vector<8x8xbf16>, vector<8x8xbf16>, vector<8x8xf32> -> vector<8x8xf32>
    %cst_39 = arith.constant dense<0xFF800000> : vector<8xf32>
    %67 = vector.multi_reduction <maximumf>, %66, %cst_39 [1] : vector<8x8xf32> to vector<8xf32>
    %68 = vector.shape_cast %67 : vector<8xf32> to vector<8x1xf32>
    %69 = vector.broadcast %68 : vector<8x1xf32> to vector<8x8xf32>
    %70 = arith.subf %66, %69 : vector<8x8xf32>
    %71 = math.exp %70 : vector<8x8xf32>
    %cst_40 = arith.constant dense<0.000000e+00> : vector<8xf32>
    %72 = vector.multi_reduction <add>, %71, %cst_40 [1] : vector<8x8xf32> to vector<8xf32>
    %73 = vector.shape_cast %72 : vector<8xf32> to vector<8x1xf32>
    %74 = arith.truncf %71 : vector<8x8xf32> to vector<8x8xbf16>
    %cst_41 = arith.constant dense<0.000000e+00> : vector<8x8xf32>
    %75 = tpu.matmul %74, %65, %cst_41 {dimension_numbers = #tpu.dot_dimension_numbers<[1], [0], [0], [1], [0, 0, 1, 1], [], []>} : vector<8x8xbf16>, vector<8x8xbf16>, vector<8x8xf32> -> vector<8x8xf32>
    %76 = vector.broadcast %73 : vector<8x1xf32> to vector<8x8xf32>
    %77 = arith.divf %75, %76 : vector<8x8xf32>
    %78 = arith.truncf %77 : vector<8x8xf32> to vector<8x8xbf16>
    %c0_42 = arith.constant 0 : index
    %c24_43 = arith.constant 24 : index
    %79 = vector.load %arg23[%c0_42, %c24_43] : memref<8x32xbf16, #tpu.memory_space<vmem>>, vector<8x8xbf16>
    tpu.vector_store %arg23[%c0_42, %c24_43], %78 {strides = array<i32>} : memref<8x32xbf16, #tpu.memory_space<vmem>>, vector<8x8xbf16>,
    %c0_44 = arith.constant 0 : index
    %c0_45 = arith.constant 0 : index
    %80 = vector.load %arg23[%c0_44, %c0_45] : memref<8x32xbf16, #tpu.memory_space<vmem>>, vector<8x32xbf16>
    %c0_46 = arith.constant 0 : index
    %c0_47 = arith.constant 0 : index
    %81 = vector.load %arg10[%c0_46, %c0_47] : memref<32x32xbf16, #tpu.memory_space<vmem>>, vector<32x32xbf16>
    %cst_48 = arith.constant dense<0.000000e+00> : vector<8x32xf32>
    %82 = tpu.matmul %80, %81, %cst_48 {dimension_numbers = #tpu.dot_dimension_numbers<[1], [0], [0], [1], [0, 0, 1, 1], [], []>} : vector<8x32xbf16>, vector<32x32xbf16>, vector<8x32xf32> -> vector<8x32xf32>
    %c0_49 = arith.constant 0 : index
    %c0_50 = arith.constant 0 : index
    %83 = vector.load %arg11[%c0_49, %c0_50] : memref<1x32xf32, #tpu.memory_space<vmem>>, vector<1x32xf32>
    %84 = vector.broadcast %83 : vector<1x32xf32> to vector<8x32xf32>
    %85 = arith.addf %82, %84 : vector<8x32xf32>
    %86 = arith.addf %85, %4 : vector<8x32xf32>
    %c0_51 = arith.constant 0 : index
    %c0_52 = arith.constant 0 : index
    %87 = vector.load %arg12[%c0_51, %c0_52] : memref<1x32xf32, #tpu.memory_space<vmem>>, vector<1x32xf32>
    %c0_53 = arith.constant 0 : index
    %c0_54 = arith.constant 0 : index
    %88 = vector.load %arg13[%c0_53, %c0_54] : memref<1x32xf32, #tpu.memory_space<vmem>>, vector<1x32xf32>
    %cst_55 = arith.constant dense<0.000000e+00> : vector<8xf32>
    %89 = vector.multi_reduction <add>, %86, %cst_55 [1] : vector<8x32xf32> to vector<8xf32>
    %90 = vector.shape_cast %89 : vector<8xf32> to vector<8x1xf32>
    %cst_56 = arith.constant 3.200000e+01 : f32
    %91 = vector.broadcast %cst_56 : f32 to vector<8x1xf32>
    %92 = arith.divf %90, %91 : vector<8x1xf32>
    %93 = vector.broadcast %92 : vector<8x1xf32> to vector<8x32xf32>
    %94 = arith.subf %86, %93 : vector<8x32xf32>
    %95 = arith.mulf %94, %94 : vector<8x32xf32>
    %cst_57 = arith.constant dense<0.000000e+00> : vector<8xf32>
    %96 = vector.multi_reduction <add>, %95, %cst_57 [1] : vector<8x32xf32> to vector<8xf32>
    %97 = vector.shape_cast %96 : vector<8xf32> to vector<8x1xf32>
    %cst_58 = arith.constant 3.200000e+01 : f32
    %98 = vector.broadcast %cst_58 : f32 to vector<8x1xf32>
    %99 = arith.divf %97, %98 : vector<8x1xf32>
    %100 = vector.broadcast %92 : vector<8x1xf32> to vector<8x32xf32>
    %101 = arith.subf %86, %100 : vector<8x32xf32>
    %cst_59 = arith.constant 9.99999974E-6 : f32
    %102 = vector.broadcast %cst_59 : f32 to vector<8x1xf32>
    %103 = arith.addf %99, %102 : vector<8x1xf32>
    %104 = math.rsqrt %103 : vector<8x1xf32>
    %105 = vector.broadcast %104 : vector<8x1xf32> to vector<8x32xf32>
    %106 = arith.mulf %101, %105 : vector<8x32xf32>
    %107 = vector.broadcast %87 : vector<1x32xf32> to vector<8x32xf32>
    %108 = arith.mulf %106, %107 : vector<8x32xf32>
    %109 = vector.broadcast %88 : vector<1x32xf32> to vector<8x32xf32>
    %110 = arith.addf %108, %109 : vector<8x32xf32>
    %111 = arith.truncf %110 : vector<8x32xf32> to vector<8x32xbf16>
    %c0_60 = arith.constant 0 : index
    %c0_61 = arith.constant 0 : index
    %112 = vector.load %arg14[%c0_60, %c0_61] : memref<32x64xbf16, #tpu.memory_space<vmem>>, vector<32x64xbf16>
    %cst_62 = arith.constant dense<0.000000e+00> : vector<8x64xf32>
    %113 = tpu.matmul %111, %112, %cst_62 {dimension_numbers = #tpu.dot_dimension_numbers<[1], [0], [0], [1], [0, 0, 1, 1], [], []>} : vector<8x32xbf16>, vector<32x64xbf16>, vector<8x64xf32> -> vector<8x64xf32>
    %c0_63 = arith.constant 0 : index
    %c0_64 = arith.constant 0 : index
    %114 = vector.load %arg15[%c0_63, %c0_64] : memref<1x64xf32, #tpu.memory_space<vmem>>, vector<1x64xf32>
    %115 = vector.broadcast %114 : vector<1x64xf32> to vector<8x64xf32>
    %116 = arith.addf %113, %115 : vector<8x64xf32>
    %cst_65 = arith.constant 0.000000e+00 : f32
    %117 = vector.broadcast %cst_65 : f32 to vector<8x64xf32>
    %118 = arith.maximumf %116, %117 : vector<8x64xf32>
    %119 = arith.truncf %118 : vector<8x64xf32> to vector<8x64xbf16>
    %c0_66 = arith.constant 0 : index
    %c0_67 = arith.constant 0 : index
    %120 = vector.load %arg16[%c0_66, %c0_67] : memref<64x32xbf16, #tpu.memory_space<vmem>>, vector<64x32xbf16>
    %cst_68 = arith.constant dense<0.000000e+00> : vector<8x32xf32>
    %121 = tpu.matmul %119, %120, %cst_68 {dimension_numbers = #tpu.dot_dimension_numbers<[1], [0], [0], [1], [0, 0, 1, 1], [], []>} : vector<8x64xbf16>, vector<64x32xbf16>, vector<8x32xf32> -> vector<8x32xf32>
    %c0_69 = arith.constant 0 : index
    %c0_70 = arith.constant 0 : index
    %122 = vector.load %arg17[%c0_69, %c0_70] : memref<1x32xf32, #tpu.memory_space<vmem>>, vector<1x32xf32>
    %123 = vector.broadcast %122 : vector<1x32xf32> to vector<8x32xf32>
    %124 = arith.addf %121, %123 : vector<8x32xf32>
    %125 = arith.addf %110, %124 : vector<8x32xf32>
    %c0_71 = arith.constant 0 : index
    %c0_72 = arith.constant 0 : index
    %126 = vector.load %arg18[%c0_71, %c0_72] : memref<1x32xf32, #tpu.memory_space<vmem>>, vector<1x32xf32>
    %c0_73 = arith.constant 0 : index
    %c0_74 = arith.constant 0 : index
    %127 = vector.load %arg19[%c0_73, %c0_74] : memref<1x32xf32, #tpu.memory_space<vmem>>, vector<1x32xf32>
    %cst_75 = arith.constant dense<0.000000e+00> : vector<8xf32>
    %128 = vector.multi_reduction <add>, %125, %cst_75 [1] : vector<8x32xf32> to vector<8xf32>
    %129 = vector.shape_cast %128 : vector<8xf32> to vector<8x1xf32>
    %cst_76 = arith.constant 3.200000e+01 : f32
    %130 = vector.broadcast %cst_76 : f32 to vector<8x1xf32>
    %131 = arith.divf %129, %130 : vector<8x1xf32>
    %132 = vector.broadcast %131 : vector<8x1xf32> to vector<8x32xf32>
    %133 = arith.subf %125, %132 : vector<8x32xf32>
    %134 = arith.mulf %133, %133 : vector<8x32xf32>
    %cst_77 = arith.constant dense<0.000000e+00> : vector<8xf32>
    %135 = vector.multi_reduction <add>, %134, %cst_77 [1] : vector<8x32xf32> to vector<8xf32>
    %136 = vector.shape_cast %135 : vector<8xf32> to vector<8x1xf32>
    %cst_78 = arith.constant 3.200000e+01 : f32
    %137 = vector.broadcast %cst_78 : f32 to vector<8x1xf32>
    %138 = arith.divf %136, %137 : vector<8x1xf32>
    %139 = vector.broadcast %131 : vector<8x1xf32> to vector<8x32xf32>
    %140 = arith.subf %125, %139 : vector<8x32xf32>
    %cst_79 = arith.constant 9.99999974E-6 : f32
    %141 = vector.broadcast %cst_79 : f32 to vector<8x1xf32>
    %142 = arith.addf %138, %141 : vector<8x1xf32>
    %143 = math.rsqrt %142 : vector<8x1xf32>
    %144 = vector.broadcast %143 : vector<8x1xf32> to vector<8x32xf32>
    %145 = arith.mulf %140, %144 : vector<8x32xf32>
    %146 = vector.broadcast %126 : vector<1x32xf32> to vector<8x32xf32>
    %147 = arith.mulf %145, %146 : vector<8x32xf32>
    %148 = vector.broadcast %127 : vector<1x32xf32> to vector<8x32xf32>
    %149 = arith.addf %147, %148 : vector<8x32xf32>
    %c0_80 = arith.constant 0 : index
    %c0_81 = arith.constant 0 : index
    %c0_82 = arith.constant 0 : index
    %150 = vector.load %arg20[%c0_80, %c0_81, %c0_82] : memref<1x8x32xf32, #tpu.memory_space<vmem>>, vector<1x8x32xf32>
    %151 = vector.shape_cast %150 : vector<1x8x32xf32> to vector<8x32xf32>
    %152 = vector.shape_cast %149 : vector<8x32xf32> to vector<1x8x32xf32>
    tpu.vector_store %arg20[%c0_80, %c0_81, %c0_82], %152 {strides = array<i32>} : memref<1x8x32xf32, #tpu.memory_space<vmem>>, vector<1x8x32xf32>,
    return
  }
  func.func @transform_0(%arg0: i32, %arg1: i32) -> (i32, i32, i32) {
    %c0_i32 = arith.constant 0 : i32
    %c0_i32_0 = arith.constant 0 : i32
    return %arg0, %arg1, %c0_i32 : i32, i32, i32
  }
  func.func @transform_1(%arg0: i32, %arg1: i32) -> (i32, i32, i32) {
    %c0_i32 = arith.constant 0 : i32
    %c0_i32_0 = arith.constant 0 : i32
    %c0_i32_1 = arith.constant 0 : i32
    return %arg0, %c0_i32, %c0_i32_0 : i32, i32, i32
  }
  func.func @transform_2(%arg0: i32, %arg1: i32) -> (i32, i32) {
    %c0_i32 = arith.constant 0 : i32
    %c0_i32_0 = arith.constant 0 : i32
    %c0_i32_1 = arith.constant 0 : i32
    return %c0_i32, %c0_i32_0 : i32, i32
  }
  func.func @transform_3(%arg0: i32, %arg1: i32) -> (i32, i32) {
    %c0_i32 = arith.constant 0 : i32
    %c0_i32_0 = arith.constant 0 : i32
    %c0_i32_1 = arith.constant 0 : i32
    return %c0_i32, %c0_i32_0 : i32, i32
  }
  func.func @transform_4(%arg0: i32, %arg1: i32) -> (i32, i32) {
    %c0_i32 = arith.constant 0 : i32
    %c0_i32_0 = arith.constant 0 : i32
    %c0_i32_1 = arith.constant 0 : i32
    return %c0_i32, %c0_i32_0 : i32, i32
  }
  func.func @transform_5(%arg0: i32, %arg1: i32) -> (i32, i32) {
    %c0_i32 = arith.constant 0 : i32
    %c0_i32_0 = arith.constant 0 : i32
    %c0_i32_1 = arith.constant 0 : i32
    return %c0_i32, %c0_i32_0 : i32, i32
  }
  func.func @transform_6(%arg0: i32, %arg1: i32) -> (i32, i32) {
    %c0_i32 = arith.constant 0 : i32
    %c0_i32_0 = arith.constant 0 : i32
    %c0_i32_1 = arith.constant 0 : i32
    return %c0_i32, %c0_i32_0 : i32, i32
  }
  func.func @transform_7(%arg0: i32, %arg1: i32) -> (i32, i32) {
    %c0_i32 = arith.constant 0 : i32
    %c0_i32_0 = arith.constant 0 : i32
    %c0_i32_1 = arith.constant 0 : i32
    return %c0_i32, %c0_i32_0 : i32, i32
  }
  func.func @transform_8(%arg0: i32, %arg1: i32) -> (i32, i32) {
    %c0_i32 = arith.constant 0 : i32
    %c0_i32_0 = arith.constant 0 : i32
    %c0_i32_1 = arith.constant 0 : i32
    return %c0_i32, %c0_i32_0 : i32, i32
  }
  func.func @transform_9(%arg0: i32, %arg1: i32) -> (i32, i32) {
    %c0_i32 = arith.constant 0 : i32
    %c0_i32_0 = arith.constant 0 : i32
    %c0_i32_1 = arith.constant 0 : i32
    return %c0_i32, %c0_i32_0 : i32, i32
  }
  func.func @transform_10(%arg0: i32, %arg1: i32) -> (i32, i32) {
    %c0_i32 = arith.constant 0 : i32
    %c0_i32_0 = arith.constant 0 : i32
    %c0_i32_1 = arith.constant 0 : i32
    return %c0_i32, %c0_i32_0 : i32, i32
  }
  func.func @transform_11(%arg0: i32, %arg1: i32) -> (i32, i32) {
    %c0_i32 = arith.constant 0 : i32
    %c0_i32_0 = arith.constant 0 : i32
    %c0_i32_1 = arith.constant 0 : i32
    return %c0_i32, %c0_i32_0 : i32, i32
  }
  func.func @transform_12(%arg0: i32, %arg1: i32) -> (i32, i32) {
    %c0_i32 = arith.constant 0 : i32
    %c0_i32_0 = arith.constant 0 : i32
    %c0_i32_1 = arith.constant 0 : i32
    return %c0_i32, %c0_i32_0 : i32, i32
  }
  func.func @transform_13(%arg0: i32, %arg1: i32) -> (i32, i32) {
    %c0_i32 = arith.constant 0 : i32
    %c0_i32_0 = arith.constant 0 : i32
    %c0_i32_1 = arith.constant 0 : i32
    return %c0_i32, %c0_i32_0 : i32, i32
  }
  func.func @transform_14(%arg0: i32, %arg1: i32) -> (i32, i32) {
    %c0_i32 = arith.constant 0 : i32
    %c0_i32_0 = arith.constant 0 : i32
    %c0_i32_1 = arith.constant 0 : i32
    return %c0_i32, %c0_i32_0 : i32, i32
  }
  func.func @transform_15(%arg0: i32, %arg1: i32) -> (i32, i32) {
    %c0_i32 = arith.constant 0 : i32
    %c0_i32_0 = arith.constant 0 : i32
    %c0_i32_1 = arith.constant 0 : i32
    return %c0_i32, %c0_i32_0 : i32, i32
  }
  func.func @transform_16(%arg0: i32, %arg1: i32) -> (i32, i32) {
    %c0_i32 = arith.constant 0 : i32
    %c0_i32_0 = arith.constant 0 : i32
    %c0_i32_1 = arith.constant 0 : i32
    return %c0_i32, %c0_i32_0 : i32, i32
  }
  func.func @transform_17(%arg0: i32, %arg1: i32) -> (i32, i32) {
    %c0_i32 = arith.constant 0 : i32
    %c0_i32_0 = arith.constant 0 : i32
    %c0_i32_1 = arith.constant 0 : i32
    return %c0_i32, %c0_i32_0 : i32, i32
  }
  func.func @transform_18(%arg0: i32, %arg1: i32) -> (i32, i32, i32) {
    %c0_i32 = arith.constant 0 : i32
    %c0_i32_0 = arith.constant 0 : i32
    return %arg0, %arg1, %c0_i32 : i32, i32, i32
  }
}

</mosaic_0001>

<llo_original>
// kernel: tpu_custom_call.1
$region0: #{tpu_custom_call.1}
  #allocation0 [shape = 'u32[]', space=smem, size = 0x4, offset = 0x4, fixed_abs, tag = 'smem constant byte address 0x4 - core index']
  #allocation1 [shape = 'u32[72,128]{1,0:T(1,128)}', space=vmem, size = 0x9000, scoped, tag = 'internal scratch']
  #allocation2 [shape = 'bf16[8,32]{1,0:T(8,128)(2,1)}', space=vmem, size = 0x800, scoped, tag = 'scratch operand']
  #allocation3 [shape = 'bf16[8,32]{1,0:T(8,128)(2,1)}', space=vmem, size = 0x800, scoped, tag = 'scratch operand']
  #allocation4 [shape = 'bf16[8,32]{1,0:T(8,128)(2,1)}', space=vmem, size = 0x800, scoped, tag = 'scratch operand']
  %s0 = inlined_call_operand.vmem [shape: f32[2,8,32], index: 0, kind: input, shape index: {}]
  %s1 = inlined_call_operand.hbm [shape: bf16[2,8,32], index: 1, kind: input, shape index: {}]
  %s2 = inlined_call_operand.vmem [shape: bf16[32,32], index: 2, kind: input, shape index: {}]
  %s3 = inlined_call_operand.vmem [shape: f32[1,32], index: 3, kind: input, shape index: {}]
  %s4 = inlined_call_operand.vmem [shape: bf16[32,32], index: 4, kind: input, shape index: {}]
  %s5 = inlined_call_operand.vmem [shape: f32[1,32], index: 5, kind: input, shape index: {}]
  %s6 = inlined_call_operand.hbm [shape: bf16[32,32], index: 6, kind: input, shape index: {}]
  %s7 = inlined_call_operand.vmem [shape: f32[1,32], index: 7, kind: input, shape index: {}]
  %s8 = inlined_call_operand.hbm [shape: bf16[32,32], index: 8, kind: input, shape index: {}]
  %s9 = inlined_call_operand.vmem [shape: f32[1,32], index: 9, kind: input, shape index: {}]
  %s10 = inlined_call_operand.vmem [shape: f32[1,32], index: 10, kind: input, shape index: {}]
  %s11 = inlined_call_operand.vmem [shape: f32[1,32], index: 11, kind: input, shape index: {}]
  %s12 = inlined_call_operand.hbm [shape: bf16[32,64], index: 12, kind: input, shape index: {}]
  %s13 = inlined_call_operand.vmem [shape: f32[1,64], index: 13, kind: input, shape index: {}]
  %s14 = inlined_call_operand.vmem [shape: bf16[64,32], index: 14, kind: input, shape index: {}]
  %s15 = inlined_call_operand.vmem [shape: f32[1,32], index: 15, kind: input, shape index: {}]
  %s16 = inlined_call_operand.vmem [shape: f32[1,32], index: 16, kind: input, shape index: {}]
  %s17 = inlined_call_operand.vmem [shape: f32[1,32], index: 17, kind: input, shape index: {}]
  %s18 = inlined_call_operand.hbm [shape: f32[2,8,32], index: 18, kind: output, shape index: {}]
  %s19 = sld [smem:[#allocation0]]
  $region125: #{tpu_custom_call.1} parent=0
    _
  %s21 = ssub.s32 1, %s19
  %s22 = scalar_select 0, %s21, %s19
  $region1: #{tpu_custom_call.1} parent=0
    #allocation5 [shape = 'u8[4096]{0}', space=vmem, size = 0x1000, scoped, tag = 'input window, operand 1']
    #allocation6 [shape = 's32[2]{0}', space=sflag, size = 0x8, scoped, tag = 'scoped memory for tpu_custom_call.1']
    #allocation7 [shape = 's32[2]{0}', space=sflag, size = 0x8, scoped, tag = 'scoped memory for tpu_custom_call.1']
    #allocation8 [shape = 'u8[8192]{0}', space=vmem, size = 0x2000, scoped, tag = 'input window, operand 6, single buffered']
    #allocation9 [shape = 's32[1]{0}', space=sflag, size = 0x4, scoped, tag = 'scoped memory for tpu_custom_call.1']
    #allocation10 [shape = 'u8[8192]{0}', space=vmem, size = 0x2000, scoped, tag = 'input window, operand 8, single buffered']
    #allocation11 [shape = 'u8[8192]{0}', space=vmem, size = 0x2000, scoped, tag = 'input window, operand 12, single buffered']
    #allocation12 [shape = 's32[1]{0}', space=sflag, size = 0x4, scoped, tag = 'scoped memory for tpu_custom_call.1']
    #allocation13 [shape = 'u8[8192]{0}', space=vmem, size = 0x2000, scoped, tag = 'output window, operand 0']
    %23 = vsyncpa [#allocation6], 0
    %s24 = scalar_lea.sflag [#allocation6], 1
    %25 = vsyncpa %s24, 0
    %26 = vsyncpa [#allocation9], 0
    %27 = vsyncpa [#allocation12], 0
    %28 = vsyncpa [#allocation7], 0
    %s29 = scalar_lea.sflag [#allocation7], 1
    %30 = vsyncpa %s29, 0
    loop: start=0, step=1, limit=4
    $region2: #{tpu_custom_call.1} parent=1 // loop_pre_header
      _
    $region3: #{tpu_custom_call.1} parent=1 // loop_header
      %s32 = sphi 0, %s36
      %p33 = scmp.ge.s32.totalorder %s32, 4
      %s39 = sphi 0, %s51
      %s40 = sphi 0, %s47
      %s41 = sphi 0, %s39
      %s42 = sphi 0, %s40
      %s43 = sphi 0, %s41
      %s44 = sphi 0, %s42
      %s56 = sphi 0, %s58
      %s59 = sphi 0, %s56
      %s60 = sphi 0, %s59
      %s76 = sphi 0, %s60
      %s82 = sphi 0, %s84
      %s85 = sphi 0, %s82
      %s86 = sphi 0, %s85
      %s102 = sphi 0, %s86
      %s106 = sphi 0, %s106
      %s108 = sphi 0, %s106
      %s109 = sphi 0, %s108
      %s123 = sphi 0, %s109
      %s127 = sphi 0, %s127
      %s129 = sphi 0, %s127
      %s130 = sphi 0, %s129
      %s144 = sphi 0, %s130
      %s148 = sphi 0, %s148
      %s150 = sphi 0, %s148
      %s151 = sphi 0, %s150
      %s165 = sphi 0, %s151
      %s169 = sphi 0, %s169
      %s171 = sphi 0, %s169
      %s172 = sphi 0, %s171
      %s186 = sphi 0, %s172
      %s190 = sphi 0, %s190
      %s192 = sphi 0, %s190
      %s193 = sphi 0, %s192
      %s207 = sphi 0, %s193
      %s211 = sphi 0, %s211
      %s213 = sphi 0, %s211
      %s214 = sphi 0, %s213
      %s228 = sphi 0, %s214
      %s232 = sphi 0, %s232
      %s234 = sphi 0, %s232
      %s235 = sphi 0, %s234
      %s249 = sphi 0, %s235
      %s253 = sphi 0, %s253
      %s255 = sphi 0, %s253
      %s256 = sphi 0, %s255
      %s270 = sphi 0, %s256
      %s274 = sphi 0, %s274
      %s276 = sphi 0, %s274
      %s277 = sphi 0, %s276
      %s291 = sphi 0, %s277
      %s295 = sphi 0, %s295
      %s297 = sphi 0, %s295
      %s298 = sphi 0, %s297
      %s312 = sphi 0, %s298
      %s316 = sphi 0, %s316
      %s318 = sphi 0, %s316
      %s319 = sphi 0, %s318
      %s333 = sphi 0, %s319
      %s337 = sphi 0, %s337
      %s339 = sphi 0, %s337
      %s340 = sphi 0, %s339
      %s354 = sphi 0, %s340
      %s358 = sphi 0, %s358
      %s360 = sphi 0, %s358
      %s361 = sphi 0, %s360
      %s375 = sphi 0, %s361
      %s379 = sphi 0, %s379
      %s381 = sphi 0, %s379
      %s382 = sphi 0, %s381
      %s396 = sphi 0, %s382
      %s400 = sphi 0, %s400
      %s402 = sphi 0, %s400
      %s403 = sphi 0, %s402
      %s417 = sphi 0, %s403
      %s421 = sphi 0, %s421
      %s423 = sphi 0, %s421
      %s424 = sphi 0, %s423
      %s438 = sphi 0, %s424
      %s446 = sphi 0, %s448
      %s449 = sphi 0, %s446
      %s450 = sphi 0, %s449
      %s466 = sphi 0, %s450
    $region4: #{tpu_custom_call.1} parent=1 // loop_header_branch
      %35 = sbr.rel (%p33) target = $region8
    $region5: #{tpu_custom_call.1} parent=1 // loop_body
      %s37 = ssub.s32 %s32, 1
      %s38 = ssub.s32 %s32, 2
      %s45 = sadd.s32 1, %s40
      %p46 = scmp.ge.s32.totalorder %s45, 1
      %s47 = scalar_select %p46, 0, %s45
      %s48 = sadd.s32 1, %s39
      %s49 = scalar_select %p46, %s48, %s39
      %p50 = scmp.ge.s32.totalorder %s49, 2
      %s51 = scalar_select %p50, 0, %s49
      %s52 = ssub.s32 %s39, %s51
      %s53 = ssub.s32 %s40, %s47
      %s54 = sor.u32 %s52, %s53
      %p55 = scmp.eq.s32.totalorder %s54, 0
      %s57 = sadd.s32 %s56, 1
      %s58 = scalar_select %p55, %s56, %s57
      %p61 = pneg %p55
      %p62 = scmp.eq.s32.totalorder %s32, 1
      %p63 = por %p61, %p62
      %p64 = scmp.ne.s32.totalorder %s56, %s59
      %p65 = scmp.eq.s32.totalorder %s32, 0
      %p66 = por %p64, %p65
      %p67 = scmp.ne.s32.totalorder %s56, %s59
      %p68 = scmp.eq.s32.totalorder %s37, 1
      %p69 = por %p67, %p68
      %p70 = scmp.ne.s32.totalorder %s59, %s60
      %p71 = scmp.eq.s32.totalorder %s37, 0
      %p72 = por %p70, %p71
      %p73 = scmp.ne.s32.totalorder %s59, %s60
      %p74 = scmp.eq.s32.totalorder %s38, 1
      %p75 = por %p73, %p74
      %p77 = scmp.ne.s32.totalorder %s60, %s76
      %p78 = scmp.eq.s32.totalorder %s38, 0
      %p79 = por %p77, %p78
      %s80 = ssub.s32 %s39, %s51
      %p81 = scmp.eq.s32.totalorder %s80, 0
      %s83 = sadd.s32 %s82, 1
      %s84 = scalar_select %p81, %s82, %s83
      %p87 = pneg %p81
      %p88 = scmp.eq.s32.totalorder %s32, 1
      %p89 = por %p87, %p88
      %p90 = scmp.ne.s32.totalorder %s82, %s85
      %p91 = scmp.eq.s32.totalorder %s32, 0
      %p92 = por %p90, %p91
      %p93 = scmp.ne.s32.totalorder %s82, %s85
      %p94 = scmp.eq.s32.totalorder %s37, 1
      %p95 = por %p93, %p94
      %p96 = scmp.ne.s32.totalorder %s85, %s86
      %p97 = scmp.eq.s32.totalorder %s37, 0
      %p98 = por %p96, %p97
      %p99 = scmp.ne.s32.totalorder %s85, %s86
      %p100 = scmp.eq.s32.totalorder %s38, 1
      %p101 = por %p99, %p100
      %p103 = scmp.ne.s32.totalorder %s86, %s102
      %p104 = scmp.eq.s32.totalorder %s38, 0
      %p105 = por %p103, %p104
      %s107 = sadd.s32 %s106, 1
      %p110 = scmp.eq.s32.totalorder %s32, 1
      %p111 = scmp.ne.s32.totalorder %s106, %s108
      %p112 = scmp.eq.s32.totalorder %s32, 0
      %p113 = por %p111, %p112
      %p114 = scmp.ne.s32.totalorder %s106, %s108
      %p115 = scmp.eq.s32.totalorder %s37, 1
      %p116 = por %p114, %p115
      %p117 = scmp.ne.s32.totalorder %s108, %s109
      %p118 = scmp.eq.s32.totalorder %s37, 0
      %p119 = por %p117, %p118
      %p120 = scmp.ne.s32.totalorder %s108, %s109
      %p121 = scmp.eq.s32.totalorder %s38, 1
      %p122 = por %p120, %p121
      %p124 = scmp.ne.s32.totalorder %s109, %s123
      %p125 = scmp.eq.s32.totalorder %s38, 0
      %p126 = por %p124, %p125
      %s128 = sadd.s32 %s127, 1
      %p131 = scmp.eq.s32.totalorder %s32, 1
      %p132 = scmp.ne.s32.totalorder %s127, %s129
      %p133 = scmp.eq.s32.totalorder %s32, 0
      %p134 = por %p132, %p133
      %p135 = scmp.ne.s32.totalorder %s127, %s129
      %p136 = scmp.eq.s32.totalorder %s37, 1
      %p137 = por %p135, %p136
      %p138 = scmp.ne.s32.totalorder %s129, %s130
      %p139 = scmp.eq.s32.totalorder %s37, 0
      %p140 = por %p138, %p139
      %p141 = scmp.ne.s32.totalorder %s129, %s130
      %p142 = scmp.eq.s32.totalorder %s38, 1
      %p143 = por %p141, %p142
      %p145 = scmp.ne.s32.totalorder %s130, %s144
      %p146 = scmp.eq.s32.totalorder %s38, 0
      %p147 = por %p145, %p146
      %s149 = sadd.s32 %s148, 1
      %p152 = scmp.eq.s32.totalorder %s32, 1
      %p153 = scmp.ne.s32.totalorder %s148, %s150
      %p154 = scmp.eq.s32.totalorder %s32, 0
      %p155 = por %p153, %p154
      %p156 = scmp.ne.s32.totalorder %s148, %s150
      %p157 = scmp.eq.s32.totalorder %s37, 1
      %p158 = por %p156, %p157
      %p159 = scmp.ne.s32.totalorder %s150, %s151
      %p160 = scmp.eq.s32.totalorder %s37, 0
      %p161 = por %p159, %p160
      %p162 = scmp.ne.s32.totalorder %s150, %s151
      %p163 = scmp.eq.s32.totalorder %s38, 1
      %p164 = por %p162, %p163
      %p166 = scmp.ne.s32.totalorder %s151, %s165
      %p167 = scmp.eq.s32.totalorder %s38, 0
      %p168 = por %p166, %p167
      %s170 = sadd.s32 %s169, 1
      %p173 = scmp.eq.s32.totalorder %s32, 1
      %p174 = scmp.ne.s32.totalorder %s169, %s171
      %p175 = scmp.eq.s32.totalorder %s32, 0
      %p176 = por %p174, %p175
      %p177 = scmp.ne.s32.totalorder %s169, %s171
      %p178 = scmp.eq.s32.totalorder %s37, 1
      %p179 = por %p177, %p178
      %p180 = scmp.ne.s32.totalorder %s171, %s172
      %p181 = scmp.eq.s32.totalorder %s37, 0
      %p182 = por %p180, %p181
      %p183 = scmp.ne.s32.totalorder %s171, %s172
      %p184 = scmp.eq.s32.totalorder %s38, 1
      %p185 = por %p183, %p184
      %p187 = scmp.ne.s32.totalorder %s172, %s186
      %p188 = scmp.eq.s32.totalorder %s38, 0
      %p189 = por %p187, %p188
      %s191 = sadd.s32 %s190, 1
      %p194 = scmp.eq.s32.totalorder %s32, 1
      %p195 = scmp.ne.s32.totalorder %s190, %s192
      %p196 = scmp.eq.s32.totalorder %s32, 0
      %p197 = por %p195, %p196
      %p198 = scmp.ne.s32.totalorder %s190, %s192
      %p199 = scmp.eq.s32.totalorder %s37, 1
      %p200 = por %p198, %p199
      %p201 = scmp.ne.s32.totalorder %s192, %s193
      %p202 = scmp.eq.s32.totalorder %s37, 0
      %p203 = por %p201, %p202
      %p204 = scmp.ne.s32.totalorder %s192, %s193
      %p205 = scmp.eq.s32.totalorder %s38, 1
      %p206 = por %p204, %p205
      %p208 = scmp.ne.s32.totalorder %s193, %s207
      %p209 = scmp.eq.s32.totalorder %s38, 0
      %p210 = por %p208, %p209
      %s212 = sadd.s32 %s211, 1
      %p215 = scmp.eq.s32.totalorder %s32, 1
      %p216 = scmp.ne.s32.totalorder %s211, %s213
      %p217 = scmp.eq.s32.totalorder %s32, 0
      %p218 = por %p216, %p217
      %p219 = scmp.ne.s32.totalorder %s211, %s213
      %p220 = scmp.eq.s32.totalorder %s37, 1
      %p221 = por %p219, %p220
      %p222 = scmp.ne.s32.totalorder %s213, %s214
      %p223 = scmp.eq.s32.totalorder %s37, 0
      %p224 = por %p222, %p223
      %p225 = scmp.ne.s32.totalorder %s213, %s214
      %p226 = scmp.eq.s32.totalorder %s38, 1
      %p227 = por %p225, %p226
      %p229 = scmp.ne.s32.totalorder %s214, %s228
      %p230 = scmp.eq.s32.totalorder %s38, 0
      %p231 = por %p229, %p230
      %s233 = sadd.s32 %s232, 1
      %p236 = scmp.eq.s32.totalorder %s32, 1
      %p237 = scmp.ne.s32.totalorder %s232, %s234
      %p238 = scmp.eq.s32.totalorder %s32, 0
      %p239 = por %p237, %p238
      %p240 = scmp.ne.s32.totalorder %s232, %s234
      %p241 = scmp.eq.s32.totalorder %s37, 1
      %p242 = por %p240, %p241
      %p243 = scmp.ne.s32.totalorder %s234, %s235
      %p244 = scmp.eq.s32.totalorder %s37, 0
      %p245 = por %p243, %p244
      %p246 = scmp.ne.s32.totalorder %s234, %s235
      %p247 = scmp.eq.s32.totalorder %s38, 1
      %p248 = por %p246, %p247
      %p250 = scmp.ne.s32.totalorder %s235, %s249
      %p251 = scmp.eq.s32.totalorder %s38, 0
      %p252 = por %p250, %p251
      %s254 = sadd.s32 %s253, 1
      %p257 = scmp.eq.s32.totalorder %s32, 1
      %p258 = scmp.ne.s32.totalorder %s253, %s255
      %p259 = scmp.eq.s32.totalorder %s32, 0
      %p260 = por %p258, %p259
      %p261 = scmp.ne.s32.totalorder %s253, %s255
      %p262 = scmp.eq.s32.totalorder %s37, 1
      %p263 = por %p261, %p262
      %p264 = scmp.ne.s32.totalorder %s255, %s256
      %p265 = scmp.eq.s32.totalorder %s37, 0
      %p266 = por %p264, %p265
      %p267 = scmp.ne.s32.totalorder %s255, %s256
      %p268 = scmp.eq.s32.totalorder %s38, 1
      %p269 = por %p267, %p268
      %p271 = scmp.ne.s32.totalorder %s256, %s270
      %p272 = scmp.eq.s32.totalorder %s38, 0
      %p273 = por %p271, %p272
      %s275 = sadd.s32 %s274, 1
      %p278 = scmp.eq.s32.totalorder %s32, 1
      %p279 = scmp.ne.s32.totalorder %s274, %s276
      %p280 = scmp.eq.s32.totalorder %s32, 0
      %p281 = por %p279, %p280
      %p282 = scmp.ne.s32.totalorder %s274, %s276
      %p283 = scmp.eq.s32.totalorder %s37, 1
      %p284 = por %p282, %p283
      %p285 = scmp.ne.s32.totalorder %s276, %s277
      %p286 = scmp.eq.s32.totalorder %s37, 0
      %p287 = por %p285, %p286
      %p288 = scmp.ne.s32.totalorder %s276, %s277
      %p289 = scmp.eq.s32.totalorder %s38, 1
      %p290 = por %p288, %p289
      %p292 = scmp.ne.s32.totalorder %s277, %s291
      %p293 = scmp.eq.s32.totalorder %s38, 0
      %p294 = por %p292, %p293
      %s296 = sadd.s32 %s295, 1
      %p299 = scmp.eq.s32.totalorder %s32, 1
      %p300 = scmp.ne.s32.totalorder %s295, %s297
      %p301 = scmp.eq.s32.totalorder %s32, 0
      %p302 = por %p300, %p301
      %p303 = scmp.ne.s32.totalorder %s295, %s297
      %p304 = scmp.eq.s32.totalorder %s37, 1
      %p305 = por %p303, %p304
      %p306 = scmp.ne.s32.totalorder %s297, %s298
      %p307 = scmp.eq.s32.totalorder %s37, 0
      %p308 = por %p306, %p307
      %p309 = scmp.ne.s32.totalorder %s297, %s298
      %p310 = scmp.eq.s32.totalorder %s38, 1
      %p311 = por %p309, %p310
      %p313 = scmp.ne.s32.totalorder %s298, %s312
      %p314 = scmp.eq.s32.totalorder %s38, 0
      %p315 = por %p313, %p314
      %s317 = sadd.s32 %s316, 1
      %p320 = scmp.eq.s32.totalorder %s32, 1
      %p321 = scmp.ne.s32.totalorder %s316, %s318
      %p322 = scmp.eq.s32.totalorder %s32, 0
      %p323 = por %p321, %p322
      %p324 = scmp.ne.s32.totalorder %s316, %s318
      %p325 = scmp.eq.s32.totalorder %s37, 1
      %p326 = por %p324, %p325
      %p327 = scmp.ne.s32.totalorder %s318, %s319
      %p328 = scmp.eq.s32.totalorder %s37, 0
      %p329 = por %p327, %p328
      %p330 = scmp.ne.s32.totalorder %s318, %s319
      %p331 = scmp.eq.s32.totalorder %s38, 1
      %p332 = por %p330, %p331
      %p334 = scmp.ne.s32.totalorder %s319, %s333
      %p335 = scmp.eq.s32.totalorder %s38, 0
      %p336 = por %p334, %p335
      %s338 = sadd.s32 %s337, 1
      %p341 = scmp.eq.s32.totalorder %s32, 1
      %p342 = scmp.ne.s32.totalorder %s337, %s339
      %p343 = scmp.eq.s32.totalorder %s32, 0
      %p344 = por %p342, %p343
      %p345 = scmp.ne.s32.totalorder %s337, %s339
      %p346 = scmp.eq.s32.totalorder %s37, 1
      %p347 = por %p345, %p346
      %p348 = scmp.ne.s32.totalorder %s339, %s340
      %p349 = scmp.eq.s32.totalorder %s37, 0
      %p350 = por %p348, %p349
      %p351 = scmp.ne.s32.totalorder %s339, %s340
      %p352 = scmp.eq.s32.totalorder %s38, 1
      %p353 = por %p351, %p352
      %p355 = scmp.ne.s32.totalorder %s340, %s354
      %p356 = scmp.eq.s32.totalorder %s38, 0
      %p357 = por %p355, %p356
      %s359 = sadd.s32 %s358, 1
      %p362 = scmp.eq.s32.totalorder %s32, 1
      %p363 = scmp.ne.s32.totalorder %s358, %s360
      %p364 = scmp.eq.s32.totalorder %s32, 0
      %p365 = por %p363, %p364
      %p366 = scmp.ne.s32.totalorder %s358, %s360
      %p367 = scmp.eq.s32.totalorder %s37, 1
      %p368 = por %p366, %p367
      %p369 = scmp.ne.s32.totalorder %s360, %s361
      %p370 = scmp.eq.s32.totalorder %s37, 0
      %p371 = por %p369, %p370
      %p372 = scmp.ne.s32.totalorder %s360, %s361
      %p373 = scmp.eq.s32.totalorder %s38, 1
      %p374 = por %p372, %p373
      %p376 = scmp.ne.s32.totalorder %s361, %s375
      %p377 = scmp.eq.s32.totalorder %s38, 0
      %p378 = por %p376, %p377
      %s380 = sadd.s32 %s379, 1
      %p383 = scmp.eq.s32.totalorder %s32, 1
      %p384 = scmp.ne.s32.totalorder %s379, %s381
      %p385 = scmp.eq.s32.totalorder %s32, 0
      %p386 = por %p384, %p385
      %p387 = scmp.ne.s32.totalorder %s379, %s381
      %p388 = scmp.eq.s32.totalorder %s37, 1
      %p389 = por %p387, %p388
      %p390 = scmp.ne.s32.totalorder %s381, %s382
      %p391 = scmp.eq.s32.totalorder %s37, 0
      %p392 = por %p390, %p391
      %p393 = scmp.ne.s32.totalorder %s381, %s382
      %p394 = scmp.eq.s32.totalorder %s38, 1
      %p395 = por %p393, %p394
      %p397 = scmp.ne.s32.totalorder %s382, %s396
      %p398 = scmp.eq.s32.totalorder %s38, 0
      %p399 = por %p397, %p398
      %s401 = sadd.s32 %s400, 1
      %p404 = scmp.eq.s32.totalorder %s32, 1
      %p405 = scmp.ne.s32.totalorder %s400, %s402
      %p406 = scmp.eq.s32.totalorder %s32, 0
      %p407 = por %p405, %p406
      %p408 = scmp.ne.s32.totalorder %s400, %s402
      %p409 = scmp.eq.s32.totalorder %s37, 1
      %p410 = por %p408, %p409
      %p411 = scmp.ne.s32.totalorder %s402, %s403
      %p412 = scmp.eq.s32.totalorder %s37, 0
      %p413 = por %p411, %p412
      %p414 = scmp.ne.s32.totalorder %s402, %s403
      %p415 = scmp.eq.s32.totalorder %s38, 1
      %p416 = por %p414, %p415
      %p418 = scmp.ne.s32.totalorder %s403, %s417
      %p419 = scmp.eq.s32.totalorder %s38, 0
      %p420 = por %p418, %p419
      %s422 = sadd.s32 %s421, 1
      %p425 = scmp.eq.s32.totalorder %s32, 1
      %p426 = scmp.ne.s32.totalorder %s421, %s423
      %p427 = scmp.eq.s32.totalorder %s32, 0
      %p428 = por %p426, %p427
      %p429 = scmp.ne.s32.totalorder %s421, %s423
      %p430 = scmp.eq.s32.totalorder %s37, 1
      %p431 = por %p429, %p430
      %p432 = scmp.ne.s32.totalorder %s423, %s424
      %p433 = scmp.eq.s32.totalorder %s37, 0
      %p434 = por %p432, %p433
      %p435 = scmp.ne.s32.totalorder %s423, %s424
      %p436 = scmp.eq.s32.totalorder %s38, 1
      %p437 = por %p435, %p436
      %p439 = scmp.ne.s32.totalorder %s424, %s438
      %p440 = scmp.eq.s32.totalorder %s38, 0
      %p441 = por %p439, %p440
      %s442 = ssub.s32 %s39, %s51
      %s443 = ssub.s32 %s40, %s47
      %s444 = sor.u32 %s442, %s443
      %p445 = scmp.eq.s32.totalorder %s444, 0
      %s447 = sadd.s32 %s446, 1
      %s448 = scalar_select %p445, %s446, %s447
      %p451 = pneg %p445
      %p452 = scmp.eq.s32.totalorder %s32, 1
      %p453 = por %p451, %p452
      %p454 = scmp.ne.s32.totalorder %s446, %s449
      %p455 = scmp.eq.s32.totalorder %s32, 0
      %p456 = por %p454, %p455
      %p457 = scmp.ne.s32.totalorder %s446, %s449
      %p458 = scmp.eq.s32.totalorder %s37, 1
      %p459 = por %p457, %p458
      %p460 = scmp.ne.s32.totalorder %s449, %s450
      %p461 = scmp.eq.s32.totalorder %s37, 0
      %p462 = por %p460, %p461
      %p463 = scmp.ne.s32.totalorder %s449, %s450
      %p464 = scmp.eq.s32.totalorder %s38, 1
      %p465 = por %p463, %p464
      %p467 = scmp.ne.s32.totalorder %s450, %s466
      %p468 = scmp.eq.s32.totalorder %s38, 0
      %p469 = por %p467, %p468
      %p470 = scmp.le.s32.totalorder 1, %s32
      %p471 = scmp.lt.s32.totalorder %s32, 3
      %p472 = pnand %p470, %p471
      %p473 = pneg %p472
      // Predicated region
      $region9: #{tpu_custom_call.1} parent=5 // pred_check
        _
      $region10: #{tpu_custom_call.1} parent=5 // pred_check_branch
        %475 = sbr.rel (%p472) target = $region12
      $region11: #{tpu_custom_call.1} parent=5 // pred_region
        %s476 = ssub.s32 %s32, 1
        // Predicated region
        $region13: #{tpu_custom_call.1} parent=11 // pred_check
          %p477 = pneg %p119
        $region14: #{tpu_custom_call.1} parent=11 // pred_check_branch
          %479 = sbr.rel (%p477) target = $region16
        $region15: #{tpu_custom_call.1} parent=11 // pred_region
          _
        $region16: #{tpu_custom_call.1} parent=11 // pred_fallthru
          _
        // Predicated region
        $region17: #{tpu_custom_call.1} parent=11 // pred_check
          %p480 = pneg %p140
        $region18: #{tpu_custom_call.1} parent=11 // pred_check_branch
          %482 = sbr.rel (%p480) target = $region20
        $region19: #{tpu_custom_call.1} parent=11 // pred_region
          _
        $region20: #{tpu_custom_call.1} parent=11 // pred_fallthru
          _
        // Predicated region
        $region21: #{tpu_custom_call.1} parent=11 // pred_check
          %p483 = pneg %p161
        $region22: #{tpu_custom_call.1} parent=11 // pred_check_branch
          %485 = sbr.rel (%p483) target = $region24
        $region23: #{tpu_custom_call.1} parent=11 // pred_region
          _
        $region24: #{tpu_custom_call.1} parent=11 // pred_fallthru
          _
        // Predicated region
        $region25: #{tpu_custom_call.1} parent=11 // pred_check
          %p486 = pneg %p182
        $region26: #{tpu_custom_call.1} parent=11 // pred_check_branch
          %488 = sbr.rel (%p486) target = $region28
        $region27: #{tpu_custom_call.1} parent=11 // pred_region
          _
        $region28: #{tpu_custom_call.1} parent=11 // pred_fallthru
          _
        // Predicated region
        $region29: #{tpu_custom_call.1} parent=11 // pred_check
          %p489 = pneg %p203
        $region30: #{tpu_custom_call.1} parent=11 // pred_check_branch
          %491 = sbr.rel (%p489) target = $region32
        $region31: #{tpu_custom_call.1} parent=11 // pred_region
          %493 = vsyncadd [#allocation9], 0
          %s494 = sshll.u32 %s6, 4
          %s495 = int_to_ptr.hbm [resolvable:$true] %s494
          %s496 = sshll.u32 [#allocation8], 4
          %s497 = int_to_ptr.vmem [resolvable:$true] %s496
          %502 = dma.hbm_to_vmem [thread:$0]  %s495, 256, %s497, [#allocation9], 64, 64, 4
        $region32: #{tpu_custom_call.1} parent=11 // pred_fallthru
          _
        // Predicated region
        $region33: #{tpu_custom_call.1} parent=11 // pred_check
          %p503 = pneg %p224
        $region34: #{tpu_custom_call.1} parent=11 // pred_check_branch
          %505 = sbr.rel (%p503) target = $region36
        $region35: #{tpu_custom_call.1} parent=11 // pred_region
          _
        $region36: #{tpu_custom_call.1} parent=11 // pred_fallthru
          _
        // Predicated region
        $region37: #{tpu_custom_call.1} parent=11 // pred_check
          %p506 = pneg %p245
        $region38: #{tpu_custom_call.1} parent=11 // pred_check_branch
          %508 = sbr.rel (%p506) target = $region40
        $region39: #{tpu_custom_call.1} parent=11 // pred_region
          %510 = vsyncadd [#allocation9], 0
          %s511 = sshll.u32 %s8, 4
          %s512 = int_to_ptr.hbm [resolvable:$true] %s511
          %s513 = sshll.u32 [#allocation10], 4
          %s514 = int_to_ptr.vmem [resolvable:$true] %s513
          %519 = dma.hbm_to_vmem [thread:$0]  %s512, 256, %s514, [#allocation9], 64, 64, 4
        $region40: #{tpu_custom_call.1} parent=11 // pred_fallthru
          _
        // Predicated region
        $region41: #{tpu_custom_call.1} parent=11 // pred_check
          %p520 = pneg %p266
        $region42: #{tpu_custom_call.1} parent=11 // pred_check_branch
          %522 = sbr.rel (%p520) target = $region44
        $region43: #{tpu_custom_call.1} parent=11 // pred_region
          _
        $region44: #{tpu_custom_call.1} parent=11 // pred_fallthru
          _
        // Predicated region
        $region45: #{tpu_custom_call.1} parent=11 // pred_check
          %p523 = pneg %p287
        $region46: #{tpu_custom_call.1} parent=11 // pred_check_branch
          %525 = sbr.rel (%p523) target = $region48
        $region47: #{tpu_custom_call.1} parent=11 // pred_region
          _
        $region48: #{tpu_custom_call.1} parent=11 // pred_fallthru
          _
        // Predicated region
        $region49: #{tpu_custom_call.1} parent=11 // pred_check
          %p526 = pneg %p308
        $region50: #{tpu_custom_call.1} parent=11 // pred_check_branch
          %528 = sbr.rel (%p526) target = $region52
        $region51: #{tpu_custom_call.1} parent=11 // pred_region
          _
        $region52: #{tpu_custom_call.1} parent=11 // pred_fallthru
          _
        // Predicated region
        $region53: #{tpu_custom_call.1} parent=11 // pred_check
          %p529 = pneg %p329
        $region54: #{tpu_custom_call.1} parent=11 // pred_check_branch
          %531 = sbr.rel (%p529) target = $region56
        $region55: #{tpu_custom_call.1} parent=11 // pred_region
          %533 = vsyncadd [#allocation12], 0
          %s534 = sshll.u32 %s12, 4
          %s535 = int_to_ptr.hbm [resolvable:$true] %s534
          %s536 = sshll.u32 [#allocation11], 4
          %s537 = int_to_ptr.vmem [resolvable:$true] %s536
          %542 = dma.hbm_to_vmem [thread:$0]  %s535, 256, %s537, [#allocation12], 64, 64, 4
        $region56: #{tpu_custom_call.1} parent=11 // pred_fallthru
          _
        // Predicated region
        $region57: #{tpu_custom_call.1} parent=11 // pred_check
          %p543 = pneg %p350
        $region58: #{tpu_custom_call.1} parent=11 // pred_check_branch
          %545 = sbr.rel (%p543) target = $region60
        $region59: #{tpu_custom_call.1} parent=11 // pred_region
          _
        $region60: #{tpu_custom_call.1} parent=11 // pred_fallthru
          _
        // Predicated region
        $region61: #{tpu_custom_call.1} parent=11 // pred_check
          %p546 = pneg %p371
        $region62: #{tpu_custom_call.1} parent=11 // pred_check_branch
          %548 = sbr.rel (%p546) target = $region64
        $region63: #{tpu_custom_call.1} parent=11 // pred_region
          _
        $region64: #{tpu_custom_call.1} parent=11 // pred_fallthru
          _
        // Predicated region
        $region65: #{tpu_custom_call.1} parent=11 // pred_check
          %p549 = pneg %p392
        $region66: #{tpu_custom_call.1} parent=11 // pred_check_branch
          %551 = sbr.rel (%p549) target = $region68
        $region67: #{tpu_custom_call.1} parent=11 // pred_region
          _
        $region68: #{tpu_custom_call.1} parent=11 // pred_fallthru
          _
        // Predicated region
        $region69: #{tpu_custom_call.1} parent=11 // pred_check
          %p552 = pneg %p413
        $region70: #{tpu_custom_call.1} parent=11 // pred_check_branch
          %554 = sbr.rel (%p552) target = $region72
        $region71: #{tpu_custom_call.1} parent=11 // pred_region
          _
        $region72: #{tpu_custom_call.1} parent=11 // pred_fallthru
          _
        // Predicated region
        $region73: #{tpu_custom_call.1} parent=11 // pred_check
          %p555 = pneg %p434
        $region74: #{tpu_custom_call.1} parent=11 // pred_check_branch
          %557 = sbr.rel (%p555) target = $region76
        $region75: #{tpu_custom_call.1} parent=11 // pred_region
          _
        $region76: #{tpu_custom_call.1} parent=11 // pred_fallthru
          _
      $region12: #{tpu_custom_call.1} parent=5 // pred_fallthru
        _
      %p558 = scmp.lt.s32.totalorder %s32, 2
      // Predicated region
      $region77: #{tpu_custom_call.1} parent=5 // pred_check
        %p559 = pneg %p558
      $region78: #{tpu_custom_call.1} parent=5 // pred_check_branch
        %561 = sbr.rel (%p559) target = $region80
      $region79: #{tpu_custom_call.1} parent=5 // pred_region
        // Predicated region
        $region81: #{tpu_custom_call.1} parent=79 // pred_check
          %p562 = pneg %p66
        $region82: #{tpu_custom_call.1} parent=79 // pred_check_branch
          %564 = sbr.rel (%p562) target = $region84
        $region83: #{tpu_custom_call.1} parent=79 // pred_region
          %p565 = scmp.lt.s32.totalorder %s39, 1
          %s566 = scalar_select %p565, %s39, 1
          %p567 = scmp.lt.s32.totalorder %s40, 0
          %s568 = scalar_select %p567, %s40, 0
          %s569 = sadd.s32 %s568, %s566
          %s570 = smul.addr %s569, 8
          %s571 = scalar_lea.vmem %s0, %s570
        $region84: #{tpu_custom_call.1} parent=79 // pred_fallthru
          _
        // Predicated region
        $region85: #{tpu_custom_call.1} parent=79 // pred_check
          %p572 = pneg %p92
        $region86: #{tpu_custom_call.1} parent=79 // pred_check_branch
          %574 = sbr.rel (%p572) target = $region88
        $region87: #{tpu_custom_call.1} parent=79 // pred_region
          %s575 = sand.u32 %s82, 1
          %s576 = scalar_lea.sflag [#allocation6], %s575
          %s577 = sand.u32 %s82, 1
          %s578 = smul.addr %s577, 4
          %s579 = scalar_lea.vmem [#allocation5], %s578
          %581 = vsyncadd %s576, 0
          %s582 = smul.addr %s39, 4
          %s583 = scalar_lea.hbm %s1, %s582
          %s585 = sshll.u32 %s583, 4
          %s586 = int_to_ptr.hbm [resolvable:$true] %s585
          %s587 = sshll.u32 %s579, 4
          %s588 = int_to_ptr.vmem [resolvable:$true] %s587
          %590 = dma.hbm_to_vmem [thread:$0]  %s586, 64, %s588, %s576
        $region88: #{tpu_custom_call.1} parent=79 // pred_fallthru
          _
      $region80: #{tpu_custom_call.1} parent=5 // pred_fallthru
        _
      %p591 = scmp.le.s32.totalorder 1, %s32
      %p592 = scmp.lt.s32.totalorder %s32, 3
      %p593 = pnand %p591, %p592
      %p594 = pneg %p593
      // Predicated region
      $region89: #{tpu_custom_call.1} parent=5 // pred_check
        _
      $region90: #{tpu_custom_call.1} parent=5 // pred_check_branch
        %596 = sbr.rel (%p593) target = $region92
      $region91: #{tpu_custom_call.1} parent=5 // pred_region
        %s597 = ssub.s32 %s32, 1
        %s598 = sand.u32 %s85, 1
        %s599 = scalar_lea.sflag [#allocation6], %s598
        %s600 = sand.u32 %s85, 1
        %s601 = smul.addr %s600, 4
        %s602 = scalar_lea.vmem [#allocation5], %s601
        // Predicated region
        $region93: #{tpu_custom_call.1} parent=91 // pred_check
          %p603 = pneg %p98
        $region94: #{tpu_custom_call.1} parent=91 // pred_check_branch
          %605 = sbr.rel (%p603) target = $region96
        $region95: #{tpu_custom_call.1} parent=91 // pred_region
          %607 = dma.done %s599, 64
        $region96: #{tpu_custom_call.1} parent=91 // pred_fallthru
          _
        // Predicated region
        $region97: #{tpu_custom_call.1} parent=91 // pred_check
          %p608 = pneg %p203
        $region98: #{tpu_custom_call.1} parent=91 // pred_check_branch
          %610 = sbr.rel (%p608) target = $region100
        $region99: #{tpu_custom_call.1} parent=91 // pred_region
          %612 = dma.done [#allocation9], 256
        $region100: #{tpu_custom_call.1} parent=91 // pred_fallthru
          _
        // Predicated region
        $region101: #{tpu_custom_call.1} parent=91 // pred_check
          %p613 = pneg %p245
        $region102: #{tpu_custom_call.1} parent=91 // pred_check_branch
          %615 = sbr.rel (%p613) target = $region104
        $region103: #{tpu_custom_call.1} parent=91 // pred_region
          %617 = dma.done [#allocation9], 256
        $region104: #{tpu_custom_call.1} parent=91 // pred_fallthru
          _
        // Predicated region
        $region105: #{tpu_custom_call.1} parent=91 // pred_check
          %p618 = pneg %p329
        $region106: #{tpu_custom_call.1} parent=91 // pred_check_branch
          %620 = sbr.rel (%p618) target = $region108
        $region107: #{tpu_custom_call.1} parent=91 // pred_region
          %622 = dma.done [#allocation12], 256
        $region108: #{tpu_custom_call.1} parent=91 // pred_fallthru
          _
        %p623 = scmp.lt.s32.totalorder %s41, 1
        %s624 = scalar_select %p623, %s41, 1
        %p625 = scmp.lt.s32.totalorder %s42, 0
        %s626 = scalar_select %p625, %s42, 0
        %s627 = sadd.s32 %s626, %s624
        %s628 = smul.addr %s627, 8
        %s629 = scalar_lea.vmem %s0, %s628
        %p630 = pneg %p72
        %p631 = pneg %p69
        %s632 = sand.u32 %s85, 1
        %s633 = scalar_lea.sflag [#allocation6], %s632
        %s634 = sand.u32 %s85, 1
        %s635 = smul.addr %s634, 4
        %s636 = scalar_lea.vmem [#allocation5], %s635
        %p637 = pneg %p98
        %p638 = pneg %p95
        %p639 = pneg %p119
        %p640 = pneg %p116
        %p641 = pneg %p140
        %p642 = pneg %p137
        %p643 = pneg %p161
        %p644 = pneg %p158
        %p645 = pneg %p182
        %p646 = pneg %p179
        %p647 = pneg %p203
        %p648 = pneg %p200
        %p649 = pneg %p224
        %p650 = pneg %p221
        %p651 = pneg %p245
        %p652 = pneg %p242
        %p653 = pneg %p266
        %p654 = pneg %p263
        %p655 = pneg %p287
        %p656 = pneg %p284
        %p657 = pneg %p308
        %p658 = pneg %p305
        %p659 = pneg %p329
        %p660 = pneg %p326
        %p661 = pneg %p350
        %p662 = pneg %p347
        %p663 = pneg %p371
        %p664 = pneg %p368
        %p665 = pneg %p392
        %p666 = pneg %p389
        %p667 = pneg %p413
        %p668 = pneg %p410
        %p669 = pneg %p434
        %p670 = pneg %p431
        %p671 = pneg %p462
        %p672 = pneg %p459
        %s673 = sand.u32 %s449, 1
        %s674 = scalar_lea.sflag [#allocation7], %s673
        %s675 = sand.u32 %s449, 1
        %s676 = smul.addr %s675, 8
        %s677 = scalar_lea.vmem [#allocation13], %s676
        %p678 = scmp.lt.s32.totalorder %s41, 1
        %s679 = scalar_select %p678, %s41, 1
        %p680 = scmp.lt.s32.totalorder %s42, 0
        %s681 = scalar_select %p680, %s42, 0
        %s682 = sadd.s32 %s681, %s679
        %s683 = smul.addr %s682, 8
        %s684 = scalar_lea.vmem %s0, %s683
        %p686 = scmp.eq.s32.totalorder %s42, 0
        // Predicated region
        $region109: #{tpu_custom_call.1} parent=91 // pred_check
          %p687 = pneg %p686
        $region110: #{tpu_custom_call.1} parent=91 // pred_check_branch
          %689 = sbr.rel (%p687) target = $region112
        $region111: #{tpu_custom_call.1} parent=91 // pred_region
          %v690 = vld [vmem:[%s602] sm:$0xf]
          %v691 = vld [vmem:[%s4] sm:$0xf]
          %v692 = vld [vmem:[%s4 + $0x4] sm:$0xf]
          %v693 = vld [vmem:[%s4 + $0x8] sm:$0xf]
          %v694 = vld [vmem:[%s4 + $0xc] sm:$0xf]
          %v695 = vld [vmem:[%s5] sm:$0x1]
          %v697 = vperm.slane %v695, 0
          %v703 = vunpack.c.l.b16 %v691
          %v704 = vunpack.c.l.b16 %v692
          %v705 = vunpack.c.l.b16 %v693
          %v706 = vunpack.c.l.b16 %v694
          %v707 = vpack.c.b16 %v704, %v703
          %v708 = vpack.c.b16 %v706, %v705
          %vm711 = vcmask 261120
          %v713 = vsel %vm711, %v690, 0
          %715 = vmatpush.bf16.msra.mxu0 0
          %716 = vmatpush.bf16.msra.mxu0 0
          %717 = vmatpush.bf16.msra.mxu0 0
          %718 = vmatpush.bf16.msra.mxu0 0
          %719 = vmatpush.bf16.msra.mxu0 0
          %720 = vmatpush.bf16.msra.mxu0 0
          %721 = vmatpush.bf16.msra.mxu0 %v708
          %722 = vmatpush.bf16.msra.mxu0 %v707
          %723 = vmatmul.bf16.gmra.mxu0 %v713
          %v724 = vpop.f32.mrf.mxu0
          %v725 = vadd.f32 %v697, %v724
          %v726 = vpop.f32.mrf.mxu0
          %727 = vdwg.mxu0
          %v728 = vld [vmem:[#allocation8] sm:$0xf]
          %v729 = vld [vmem:[#allocation8 + $0x4] sm:$0xf]
          %v730 = vld [vmem:[#allocation8 + $0x8] sm:$0xf]
          %v731 = vld [vmem:[#allocation8 + $0xc] sm:$0xf]
          %v732 = vld [vmem:[%s7] sm:$0x1]
          %v734 = vperm.slane %v732, 0
          %v740 = vunpack.c.l.b16 %v728
          %v741 = vunpack.c.l.b16 %v729
          %v742 = vunpack.c.l.b16 %v730
          %v743 = vunpack.c.l.b16 %v731
          %v744 = vpack.c.b16 %v741, %v740
          %v745 = vpack.c.b16 %v743, %v742
          %748 = vmatpush.bf16.msra.mxu0 0
          %749 = vmatpush.bf16.msra.mxu0 0
          %750 = vmatpush.bf16.msra.mxu0 0
          %751 = vmatpush.bf16.msra.mxu0 0
          %752 = vmatpush.bf16.msra.mxu0 0
          %753 = vmatpush.bf16.msra.mxu0 0
          %754 = vmatpush.bf16.msra.mxu0 %v745
          %755 = vmatpush.bf16.msra.mxu0 %v744
          %756 = vmatmul.bf16.gmra.mxu0 %v713
          %v757 = vpop.f32.mrf.mxu0
          %v758 = vadd.f32 %v734, %v757
          %v759 = vpop.f32.mrf.mxu0
          %760 = vdwg.mxu0
          %v761 = vpack.c.bf16 %v725, %v725
          %vm762 = vcmask 257024
          %763 = vst.msk [vmem:[#allocation2] sm:$0xf] %vm762, %v761
          %v764 = vpack.c.bf16 %v758, %v758
          %765 = vst.msk [vmem:[#allocation3] sm:$0xf] %vm762, %v764
        $region112: #{tpu_custom_call.1} parent=91 // pred_fallthru
          _
        %v766 = vld [vmem:[%s684] sm:$0xff]
        %v767 = vpack.c.bf16 %v766, %v766
        %v768 = vld [vmem:[%s2] sm:$0xf]
        %v769 = vld [vmem:[%s2 + $0x4] sm:$0xf]
        %v770 = vld [vmem:[%s2 + $0x8] sm:$0xf]
        %v771 = vld [vmem:[%s2 + $0xc] sm:$0xf]
        %v772 = vld [vmem:[%s3] sm:$0x1]
        %v774 = vperm.slane %v772, 0
        %v780 = vunpack.c.l.b16 %v768
        %v781 = vunpack.c.l.b16 %v769
        %v782 = vunpack.c.l.b16 %v770
        %v783 = vunpack.c.l.b16 %v771
        %v784 = vpack.c.b16 %v781, %v780
        %v785 = vpack.c.b16 %v783, %v782
        %vm788 = vcmask 261120
        %v790 = vsel %vm788, %v767, 0
        %792 = vmatpush.bf16.msra.mxu0 0
        %793 = vmatpush.bf16.msra.mxu0 0
        %794 = vmatpush.bf16.msra.mxu0 0
        %795 = vmatpush.bf16.msra.mxu0 0
        %796 = vmatpush.bf16.msra.mxu0 0
        %797 = vmatpush.bf16.msra.mxu0 0
        %798 = vmatpush.bf16.msra.mxu0 %v785
        %799 = vmatpush.bf16.msra.mxu0 %v784
        %800 = vmatmul.bf16.gmra.mxu0 %v790
        %v801 = vpop.f32.mrf.mxu0
        %v802 = vadd.f32 %v774, %v801
        %v803 = vpop.f32.mrf.mxu0
        %804 = vdwg.mxu0
        %v805 = vpack.c.bf16 %v802, %v802
        %v806 = vld [vmem:[#allocation2] sm:$0xf]
        %v807 = vld [vmem:[#allocation3] sm:$0xf]
        %vm808 = vcmask 64512
        %v810 = vsel %vm808, %v805, 0
        %v813 = vsel %vm808, %v806, 0
        %815 = vmatpush.bf16.xpose.msra.mxu0 0
        %816 = vmatpush.bf16.xpose.msra.mxu0 0
        %817 = vmatpush.bf16.xpose.msra.mxu0 0
        %818 = vmatpush.bf16.xpose.msra.mxu0 0
        %819 = vmatpush.bf16.xpose.msra.mxu0 0
        %820 = vmatpush.bf16.xpose.msra.mxu0 0
        %821 = vmatpush.bf16.xpose.msra.mxu0 0
        %822 = vmatpush.bf16.xpose.msra.mxu0 %v813
        %823 = vmatmul.bf16.gmra.mxu0 %v810
        %v824 = vpop.f32.mrf.mxu0
        %v825 = vadd.f32 0.0, %v824
        %v826 = vpop.f32.mrf.mxu0
        %827 = vdwg.mxu0
        %v828 = vsel %vm808, %v825, -inf
        %829 = vmax.xlane.f32.xlu0 %v828
        %v830 = vpop.xlane.xlu0 %829
        %v831 = vsub.f32 %v825, %v830
        %v832 = vmul.f32 %v831, 1.442695
        %v833 = vpow.pop %v832
        %v834 = vsel %vm808, %v833, 0.0
        %835 = vadd.xlane.f32.xlu0 %v834
        %v836 = vpop.xlane.xlu0 %835
        %v837 = vpack.c.bf16 %v833, %v833
        %v839 = vsel %vm808, %v837, 0
        %vm841 = vcmask 1043456
        %v843 = vsel %vm841, %v807, 0
        %845 = vmatpush.bf16.msra.mxu0 0
        %846 = vmatpush.bf16.msra.mxu0 0
        %847 = vmatpush.bf16.msra.mxu0 0
        %848 = vmatpush.bf16.msra.mxu0 0
        %849 = vmatpush.bf16.msra.mxu0 0
        %850 = vmatpush.bf16.msra.mxu0 0
        %851 = vmatpush.bf16.msra.mxu0 0
        %852 = vmatpush.bf16.msra.mxu0 %v843
        %853 = vmatmul.bf16.gmra.mxu0 %v839
        %v854 = vpop.f32.mrf.mxu0
        %v855 = vadd.f32 0.0, %v854
        %v856 = vpop.f32.mrf.mxu0
        %857 = vdwg.mxu0
        %v858 = vrcp.pop %v836
        %v859 = vmul.f32 %v836, %v858
        %v860 = vsub.f32 1.0, %v859
        %v861 = vmul.f32 %v858, %v860
        %v862 = vadd.f32 %v858, %v861
        %vm863 = vweird.f32 %v836
        %vm864 = vweird.f32 %v858
        %vm865 = vmor %vm863, %vm864
        %v866 = vsel %vm865, %v858, %v862
        %v867 = vand.u32 2147483647, %v836
        %vm868 = vcmp.eq.f32.partialorder %v867, 8.507059e+37
        %v869 = vand.u32 %v836, 2147483648
        %v870 = vor.u32 1.1754944e-38, %v869
        %v871 = vsel %vm868, %v870, %v866
        %v872 = vmul.f32 %v855, %v871
        %v873 = vpack.c.bf16 %v872, %v872
        %vm874 = vcmask 60416
        %875 = vst.msk [vmem:[#allocation4] sm:$0xf] %vm874, %v873
        %v876 = vld [vmem:[#allocation2] sm:$0xf]
        %v877 = vld [vmem:[#allocation3] sm:$0xf]
        %v879 = vunpack.c.l.b16 %v805
        %v880 = vpack.c.b16 %v879, %v879
        %881 = vrot.lane.b32.xlu0 %v880, 120
        %v882 = vpop.permute.xlu0 %881
        %v884 = vunpack.c.l.b16 %v876
        %v885 = vpack.c.b16 %v884, %v884
        %886 = vrot.lane.b32.xlu0 %v885, 120
        %v887 = vpop.permute.xlu0 %886
        %v889 = vsel %vm808, %v882, 0
        %v892 = vsel %vm808, %v887, 0
        %894 = vmatpush.bf16.xpose.msra.mxu0 0
        %895 = vmatpush.bf16.xpose.msra.mxu0 0
        %896 = vmatpush.bf16.xpose.msra.mxu0 0
        %897 = vmatpush.bf16.xpose.msra.mxu0 0
        %898 = vmatpush.bf16.xpose.msra.mxu0 0
        %899 = vmatpush.bf16.xpose.msra.mxu0 0
        %900 = vmatpush.bf16.xpose.msra.mxu0 0
        %901 = vmatpush.bf16.xpose.msra.mxu0 %v892
        %902 = vmatmul.bf16.gmra.mxu0 %v889
        %v903 = vpop.f32.mrf.mxu0
        %v904 = vadd.f32 0.0, %v903
        %v905 = vpop.f32.mrf.mxu0
        %906 = vdwg.mxu0
        %v907 = vsel %vm808, %v904, -inf
        %908 = vmax.xlane.f32.xlu0 %v907
        %v909 = vpop.xlane.xlu0 %908
        %v910 = vsub.f32 %v904, %v909
        %v911 = vmul.f32 %v910, 1.442695
        %v912 = vpow.pop %v911
        %v913 = vsel %vm808, %v912, 0.0
        %914 = vadd.xlane.f32.xlu0 %v913
        %v915 = vpop.xlane.xlu0 %914
        %v916 = vpack.c.bf16 %v912, %v912
        %v918 = vunpack.c.l.b16 %v877
        %v919 = vpack.c.b16 %v918, %v918
        %920 = vrot.lane.b32.xlu0 %v919, 120
        %v921 = vpop.permute.xlu0 %920
        %v923 = vsel %vm808, %v916, 0
        %v926 = vsel %vm841, %v921, 0
        %928 = vmatpush.bf16.msra.mxu0 0
        %929 = vmatpush.bf16.msra.mxu0 0
        %930 = vmatpush.bf16.msra.mxu0 0
        %931 = vmatpush.bf16.msra.mxu0 0
        %932 = vmatpush.bf16.msra.mxu0 0
        %933 = vmatpush.bf16.msra.mxu0 0
        %934 = vmatpush.bf16.msra.mxu0 0
        %935 = vmatpush.bf16.msra.mxu0 %v926
        %936 = vmatmul.bf16.gmra.mxu0 %v923
        %v937 = vpop.f32.mrf.mxu0
        %v938 = vadd.f32 0.0, %v937
        %v939 = vpop.f32.mrf.mxu0
        %940 = vdwg.mxu0
        %v941 = vrcp.pop %v915
        %v942 = vmul.f32 %v915, %v941
        %v943 = vsub.f32 1.0, %v942
        %v944 = vmul.f32 %v941, %v943
        %v945 = vadd.f32 %v941, %v944
        %vm946 = vweird.f32 %v915
        %vm947 = vweird.f32 %v941
        %vm948 = vmor %vm946, %vm947
        %v949 = vsel %vm948, %v941, %v945
        %v950 = vand.u32 2147483647, %v915
        %vm951 = vcmp.eq.f32.partialorder %v950, 8.507059e+37
        %v952 = vand.u32 %v915, 2147483648
        %v953 = vor.u32 1.1754944e-38, %v952
        %v954 = vsel %vm951, %v953, %v949
        %v955 = vmul.f32 %v938, %v954
        %v956 = vpack.c.bf16 %v955, %v955
        %958 = vrot.lane.b32.xlu0 %v956, 8
        %v959 = vpop.permute.xlu0 %958
        %vm961 = vcmask 126016
        %962 = vst.msk [vmem:[#allocation4] sm:$0xf] %vm961, %v959
        %v963 = vld [vmem:[#allocation2] sm:$0xf]
        %v964 = vld [vmem:[#allocation3] sm:$0xf]
        %965 = vrot.lane.b32.xlu0 %v880, 112
        %v966 = vpop.permute.xlu0 %965
        %v968 = vunpack.c.l.b16 %v963
        %v969 = vpack.c.b16 %v968, %v968
        %970 = vrot.lane.b32.xlu0 %v969, 112
        %v971 = vpop.permute.xlu0 %970
        %v973 = vsel %vm808, %v966, 0
        %v976 = vsel %vm808, %v971, 0
        %978 = vmatpush.bf16.xpose.msra.mxu0 0
        %979 = vmatpush.bf16.xpose.msra.mxu0 0
        %980 = vmatpush.bf16.xpose.msra.mxu0 0
        %981 = vmatpush.bf16.xpose.msra.mxu0 0
        %982 = vmatpush.bf16.xpose.msra.mxu0 0
        %983 = vmatpush.bf16.xpose.msra.mxu0 0
        %984 = vmatpush.bf16.xpose.msra.mxu0 0
        %985 = vmatpush.bf16.xpose.msra.mxu0 %v976
        %986 = vmatmul.bf16.gmra.mxu0 %v973
        %v987 = vpop.f32.mrf.mxu0
        %v988 = vadd.f32 0.0, %v987
        %v989 = vpop.f32.mrf.mxu0
        %990 = vdwg.mxu0
        %v991 = vsel %vm808, %v988, -inf
        %992 = vmax.xlane.f32.xlu0 %v991
        %v993 = vpop.xlane.xlu0 %992
        %v994 = vsub.f32 %v988, %v993
        %v995 = vmul.f32 %v994, 1.442695
        %v996 = vpow.pop %v995
        %v997 = vsel %vm808, %v996, 0.0
        %998 = vadd.xlane.f32.xlu0 %v997
        %v999 = vpop.xlane.xlu0 %998
        %v1000 = vpack.c.bf16 %v996, %v996
        %v1002 = vunpack.c.l.b16 %v964
        %v1003 = vpack.c.b16 %v1002, %v1002
        %1004 = vrot.lane.b32.xlu0 %v1003, 112
        %v1005 = vpop.permute.xlu0 %1004
        %v1007 = vsel %vm808, %v1000, 0
        %v1010 = vsel %vm841, %v1005, 0
        %1012 = vmatpush.bf16.msra.mxu0 0
        %1013 = vmatpush.bf16.msra.mxu0 0
        %1014 = vmatpush.bf16.msra.mxu0 0
        %1015 = vmatpush.bf16.msra.mxu0 0
        %1016 = vmatpush.bf16.msra.mxu0 0
        %1017 = vmatpush.bf16.msra.mxu0 0
        %1018 = vmatpush.bf16.msra.mxu0 0
        %1019 = vmatpush.bf16.msra.mxu0 %v1010
        %1020 = vmatmul.bf16.gmra.mxu0 %v1007
        %v1021 = vpop.f32.mrf.mxu0
        %v1022 = vadd.f32 0.0, %v1021
        %v1023 = vpop.f32.mrf.mxu0
        %1024 = vdwg.mxu0
        %v1025 = vrcp.pop %v999
        %v1026 = vmul.f32 %v999, %v1025
        %v1027 = vsub.f32 1.0, %v1026
        %v1028 = vmul.f32 %v1025, %v1027
        %v1029 = vadd.f32 %v1025, %v1028
        %vm1030 = vweird.f32 %v999
        %vm1031 = vweird.f32 %v1025
        %vm1032 = vmor %vm1030, %vm1031
        %v1033 = vsel %vm1032, %v1025, %v1029
        %v1034 = vand.u32 2147483647, %v999
        %vm1035 = vcmp.eq.f32.partialorder %v1034, 8.507059e+37
        %v1036 = vand.u32 %v999, 2147483648
        %v1037 = vor.u32 1.1754944e-38, %v1036
        %v1038 = vsel %vm1035, %v1037, %v1033
        %v1039 = vmul.f32 %v1022, %v1038
        %v1040 = vpack.c.bf16 %v1039, %v1039
        %1042 = vrot.lane.b32.xlu0 %v1040, 16
        %v1043 = vpop.permute.xlu0 %1042
        %vm1045 = vcmask 191616
        %1046 = vst.msk [vmem:[#allocation4] sm:$0xf] %vm1045, %v1043
        %v1047 = vld [vmem:[#allocation2] sm:$0xf]
        %v1048 = vld [vmem:[#allocation3] sm:$0xf]
        %1049 = vrot.lane.b32.xlu0 %v880, 104
        %v1050 = vpop.permute.xlu0 %1049
        %v1052 = vunpack.c.l.b16 %v1047
        %v1053 = vpack.c.b16 %v1052, %v1052
        %1054 = vrot.lane.b32.xlu0 %v1053, 104
        %v1055 = vpop.permute.xlu0 %1054
        %v1057 = vsel %vm808, %v1050, 0
        %v1060 = vsel %vm808, %v1055, 0
        %1062 = vmatpush.bf16.xpose.msra.mxu0 0
        %1063 = vmatpush.bf16.xpose.msra.mxu0 0
        %1064 = vmatpush.bf16.xpose.msra.mxu0 0
        %1065 = vmatpush.bf16.xpose.msra.mxu0 0
        %1066 = vmatpush.bf16.xpose.msra.mxu0 0
        %1067 = vmatpush.bf16.xpose.msra.mxu0 0
        %1068 = vmatpush.bf16.xpose.msra.mxu0 0
        %1069 = vmatpush.bf16.xpose.msra.mxu0 %v1060
        %1070 = vmatmul.bf16.gmra.mxu0 %v1057
        %v1071 = vpop.f32.mrf.mxu0
        %v1072 = vadd.f32 0.0, %v1071
        %v1073 = vpop.f32.mrf.mxu0
        %1074 = vdwg.mxu0
        %v1075 = vsel %vm808, %v1072, -inf
        %1076 = vmax.xlane.f32.xlu0 %v1075
        %v1077 = vpop.xlane.xlu0 %1076
        %v1078 = vsub.f32 %v1072, %v1077
        %v1079 = vmul.f32 %v1078, 1.442695
        %v1080 = vpow.pop %v1079
        %v1081 = vsel %vm808, %v1080, 0.0
        %1082 = vadd.xlane.f32.xlu0 %v1081
        %v1083 = vpop.xlane.xlu0 %1082
        %v1084 = vpack.c.bf16 %v1080, %v1080
        %v1086 = vunpack.c.l.b16 %v1048
        %v1087 = vpack.c.b16 %v1086, %v1086
        %1088 = vrot.lane.b32.xlu0 %v1087, 104
        %v1089 = vpop.permute.xlu0 %1088
        %v1091 = vsel %vm808, %v1084, 0
        %v1094 = vsel %vm841, %v1089, 0
        %1096 = vmatpush.bf16.msra.mxu0 0
        %1097 = vmatpush.bf16.msra.mxu0 0
        %1098 = vmatpush.bf16.msra.mxu0 0
        %1099 = vmatpush.bf16.msra.mxu0 0
        %1100 = vmatpush.bf16.msra.mxu0 0
        %1101 = vmatpush.bf16.msra.mxu0 0
        %1102 = vmatpush.bf16.msra.mxu0 0
        %1103 = vmatpush.bf16.msra.mxu0 %v1094
        %1104 = vmatmul.bf16.gmra.mxu0 %v1091
        %v1105 = vpop.f32.mrf.mxu0
        %v1106 = vadd.f32 0.0, %v1105
        %v1107 = vpop.f32.mrf.mxu0
        %1108 = vdwg.mxu0
        %v1109 = vrcp.pop %v1083
        %v1110 = vmul.f32 %v1083, %v1109
        %v1111 = vsub.f32 1.0, %v1110
        %v1112 = vmul.f32 %v1109, %v1111
        %v1113 = vadd.f32 %v1109, %v1112
        %vm1114 = vweird.f32 %v1083
        %vm1115 = vweird.f32 %v1109
        %vm1116 = vmor %vm1114, %vm1115
        %v1117 = vsel %vm1116, %v1109, %v1113
        %v1118 = vand.u32 2147483647, %v1083
        %vm1119 = vcmp.eq.f32.partialorder %v1118, 8.507059e+37
        %v1120 = vand.u32 %v1083, 2147483648
        %v1121 = vor.u32 1.1754944e-38, %v1120
        %v1122 = vsel %vm1119, %v1121, %v1117
        %v1123 = vmul.f32 %v1106, %v1122
        %v1124 = vpack.c.bf16 %v1123, %v1123
        %1126 = vrot.lane.b32.xlu0 %v1124, 24
        %v1127 = vpop.permute.xlu0 %1126
        %vm1129 = vcmask 257216
        %1130 = vst.msk [vmem:[#allocation4] sm:$0xf] %vm1129, %v1127
        %v1131 = vld [vmem:[#allocation4] sm:$0xf]
        %v1132 = vld [vmem:[#allocation10] sm:$0xf]
        %v1133 = vld [vmem:[#allocation10 + $0x4] sm:$0xf]
        %v1134 = vld [vmem:[#allocation10 + $0x8] sm:$0xf]
        %v1135 = vld [vmem:[#allocation10 + $0xc] sm:$0xf]
        %v1136 = vld [vmem:[%s9] sm:$0x1]
        %v1138 = vperm.slane %v1136, 0
        %v1144 = vunpack.c.l.b16 %v1132
        %v1145 = vunpack.c.l.b16 %v1133
        %v1146 = vunpack.c.l.b16 %v1134
        %v1147 = vunpack.c.l.b16 %v1135
        %v1148 = vpack.c.b16 %v1145, %v1144
        %v1149 = vpack.c.b16 %v1147, %v1146
        %v1153 = vsel %vm788, %v1131, 0
        %1155 = vmatpush.bf16.msra.mxu0 0
        %1156 = vmatpush.bf16.msra.mxu0 0
        %1157 = vmatpush.bf16.msra.mxu0 0
        %1158 = vmatpush.bf16.msra.mxu0 0
        %1159 = vmatpush.bf16.msra.mxu0 0
        %1160 = vmatpush.bf16.msra.mxu0 0
        %1161 = vmatpush.bf16.msra.mxu0 %v1149
        %1162 = vmatpush.bf16.msra.mxu0 %v1148
        %1163 = vmatmul.bf16.gmra.mxu0 %v1153
        %v1164 = vpop.f32.mrf.mxu0
        %v1165 = vadd.f32 %v1138, %v1164
        %v1166 = vpop.f32.mrf.mxu0
        %1167 = vdwg.mxu0
        %v1168 = vadd.f32 %v1165, %v766
        %v1169 = vld [vmem:[%s10] sm:$0x1]
        %v1170 = vld [vmem:[%s11] sm:$0x1]
        %v1171 = vsel %vm788, %v1168, 0.0
        %1172 = vadd.xlane.f32.xlu0 %v1171
        %v1173 = vpop.xlane.xlu0 %1172
        %v1174 = vrcp.pop 32.0
        %v1175 = vmul.f32 32.0, %v1174
        %v1176 = vsub.f32 1.0, %v1175
        %v1177 = vmul.f32 %v1174, %v1176
        %v1178 = vadd.f32 %v1174, %v1177
        %vm1179 = vweird.f32 %v1174
        %v1180 = vsel %vm1179, %v1174, %v1178
        %v1181 = vmul.f32 %v1173, %v1180
        %v1182 = vsub.f32 %v1168, %v1181
        %v1183 = vmul.f32 %v1182, %v1182
        %v1184 = vsel %vm788, %v1183, 0.0
        %1185 = vadd.xlane.f32.xlu0 %v1184
        %v1186 = vpop.xlane.xlu0 %1185
        %v1187 = vmul.f32 %v1186, %v1180
        %v1188 = vadd.f32 %v1187, 1e-05
        %v1189 = vrsqrt.pop %v1188
        %v1190 = vmul.f32 %v1189, %v1188
        %v1191 = vmul.f32 %v1190, %v1189
        %v1192 = vmul.f32 0.5, %v1191
        %v1193 = vsub.f32 1.5, %v1192
        %v1194 = vmul.f32 %v1189, %v1193
        %vm1195 = vweird.f32 %v1188
        %vm1196 = vweird.f32 %v1189
        %vm1197 = vmor %vm1195, %vm1196
        %v1198 = vsel %vm1197, %v1189, %v1194
        %v1199 = vmul.f32 %v1182, %v1198
        %v1201 = vperm.slane %v1169, 0
        %v1203 = vmul.f32 %v1199, %v1201
        %v1205 = vperm.slane %v1170, 0
        %v1207 = vadd.f32 %v1203, %v1205
        %v1208 = vpack.c.bf16 %v1207, %v1207
        %v1209 = vld [vmem:[#allocation11] sm:$0xf]
        %v1210 = vld [vmem:[#allocation11 + $0x4] sm:$0xf]
        %v1211 = vld [vmem:[#allocation11 + $0x8] sm:$0xf]
        %v1212 = vld [vmem:[#allocation11 + $0xc] sm:$0xf]
        %v1213 = vld [vmem:[%s13] sm:$0x1]
        %v1215 = vperm.slane %v1213, 0
        %v1221 = vunpack.c.l.b16 %v1209
        %v1222 = vunpack.c.l.b16 %v1210
        %v1223 = vunpack.c.l.b16 %v1211
        %v1224 = vunpack.c.l.b16 %v1212
        %v1225 = vpack.c.b16 %v1222, %v1221
        %v1226 = vpack.c.b16 %v1224, %v1223
        %v1230 = vsel %vm788, %v1208, 0
        %1232 = vmatpush.bf16.msra.mxu0 0
        %1233 = vmatpush.bf16.msra.mxu0 0
        %1234 = vmatpush.bf16.msra.mxu0 0
        %1235 = vmatpush.bf16.msra.mxu0 0
        %1236 = vmatpush.bf16.msra.mxu0 0
        %1237 = vmatpush.bf16.msra.mxu0 0
        %1238 = vmatpush.bf16.msra.mxu0 %v1226
        %1239 = vmatpush.bf16.msra.mxu0 %v1225
        %1240 = vmatmul.bf16.gmra.mxu0 %v1230
        %v1241 = vpop.f32.mrf.mxu0
        %v1242 = vadd.f32 %v1215, %v1241
        %v1243 = vpop.f32.mrf.mxu0
        %1244 = vdwg.mxu0
        %v1245 = vmax.f32 %v1242, 0.0
        %v1246 = vpack.c.bf16 %v1245, %v1245
        %v1247 = vld [vmem:[%s14] sm:$0xf]
        %v1248 = vld [vmem:[%s14 + $0x4] sm:$0xf]
        %v1249 = vld [vmem:[%s14 + $0x8] sm:$0xf]
        %v1250 = vld [vmem:[%s14 + $0xc] sm:$0xf]
        %v1251 = vld [vmem:[%s14 + $0x10] sm:$0xf]
        %v1252 = vld [vmem:[%s14 + $0x14] sm:$0xf]
        %v1253 = vld [vmem:[%s14 + $0x18] sm:$0xf]
        %v1254 = vld [vmem:[%s14 + $0x1c] sm:$0xf]
        %v1255 = vld [vmem:[%s15] sm:$0x1]
        %v1257 = vperm.slane %v1255, 0
        %v1267 = vunpack.c.l.b16 %v1247
        %v1268 = vunpack.c.l.b16 %v1248
        %v1269 = vunpack.c.l.b16 %v1249
        %v1270 = vunpack.c.l.b16 %v1250
        %v1271 = vunpack.c.l.b16 %v1251
        %v1272 = vunpack.c.l.b16 %v1252
        %v1273 = vunpack.c.l.b16 %v1253
        %v1274 = vunpack.c.l.b16 %v1254
        %v1275 = vpack.c.b16 %v1268, %v1267
        %v1276 = vpack.c.b16 %v1270, %v1269
        %v1277 = vpack.c.b16 %v1272, %v1271
        %v1278 = vpack.c.b16 %v1274, %v1273
        %vm1283 = vcmask 523264
        %v1285 = vsel %vm1283, %v1246, 0
        %1287 = vmatpush.bf16.msra.mxu0 0
        %1288 = vmatpush.bf16.msra.mxu0 0
        %1289 = vmatpush.bf16.msra.mxu0 0
        %1290 = vmatpush.bf16.msra.mxu0 0
        %1291 = vmatpush.bf16.msra.mxu0 %v1278
        %1292 = vmatpush.bf16.msra.mxu0 %v1277
        %1293 = vmatpush.bf16.msra.mxu0 %v1276
        %1294 = vmatpush.bf16.msra.mxu0 %v1275
        %1295 = vmatmul.bf16.gmra.mxu0 %v1285
        %v1296 = vpop.f32.mrf.mxu0
        %v1297 = vadd.f32 %v1257, %v1296
        %v1298 = vpop.f32.mrf.mxu0
        %1299 = vdwg.mxu0
        %v1300 = vadd.f32 %v1207, %v1297
        %v1301 = vld [vmem:[%s16] sm:$0x1]
        %v1302 = vld [vmem:[%s17] sm:$0x1]
        %v1303 = vsel %vm788, %v1300, 0.0
        %1304 = vadd.xlane.f32.xlu0 %v1303
        %v1305 = vpop.xlane.xlu0 %1304
        %v1306 = vmul.f32 %v1305, %v1180
        %v1307 = vsub.f32 %v1300, %v1306
        %v1308 = vmul.f32 %v1307, %v1307
        %v1309 = vsel %vm788, %v1308, 0.0
        %1310 = vadd.xlane.f32.xlu0 %v1309
        %v1311 = vpop.xlane.xlu0 %1310
        %v1312 = vmul.f32 %v1311, %v1180
        %v1313 = vadd.f32 %v1312, 1e-05
        %v1314 = vrsqrt.pop %v1313
        %v1315 = vmul.f32 %v1314, %v1313
        %v1316 = vmul.f32 %v1315, %v1314
        %v1317 = vmul.f32 0.5, %v1316
        %v1318 = vsub.f32 1.5, %v1317
        %v1319 = vmul.f32 %v1314, %v1318
        %vm1320 = vweird.f32 %v1313
        %vm1321 = vweird.f32 %v1314
        %vm1322 = vmor %vm1320, %vm1321
        %v1323 = vsel %vm1322, %v1314, %v1319
        %v1324 = vmul.f32 %v1307, %v1323
        %v1326 = vperm.slane %v1301, 0
        %v1328 = vmul.f32 %v1324, %v1326
        %v1330 = vperm.slane %v1302, 0
        %v1332 = vadd.f32 %v1328, %v1330
        %1333 = vst.msk [vmem:[%s677] sm:$0xff] %vm788, %v1332
        %s1334 = sand.u32 %s449, 1
        %s1335 = scalar_lea.sflag [#allocation7], %s1334
        %s1336 = sand.u32 %s449, 1
        %s1337 = smul.addr %s1336, 8
        %s1338 = scalar_lea.vmem [#allocation13], %s1337
        // Predicated region
        $region113: #{tpu_custom_call.1} parent=91 // pred_check
          %p1339 = pneg %p459
        $region114: #{tpu_custom_call.1} parent=91 // pred_check_branch
          %1341 = sbr.rel (%p1339) target = $region116
        $region115: #{tpu_custom_call.1} parent=91 // pred_region
          %1343 = vsyncadd %s1335, 0
          %s1344 = sadd.s32 %s42, %s41
          %s1345 = smul.addr %s1344, 8
          %s1346 = scalar_lea.hbm %s18, %s1345
          %s1348 = sshll.u32 %s1338, 4
          %s1349 = int_to_ptr.vmem [resolvable:$true] %s1348
          %s1350 = sshll.u32 %s1346, 4
          %s1351 = int_to_ptr.hbm [resolvable:$true] %s1350
          %1353 = dma.vmem_to_hbm [thread:$0]  %s1349, 128, %s1351, %s1335
        $region116: #{tpu_custom_call.1} parent=91 // pred_fallthru
          _
      $region92: #{tpu_custom_call.1} parent=5 // pred_fallthru
        _
      %p1354 = scmp.le.s32.totalorder 2, %s32
      // Predicated region
      $region117: #{tpu_custom_call.1} parent=5 // pred_check
        %p1355 = pneg %p1354
      $region118: #{tpu_custom_call.1} parent=5 // pred_check_branch
        %1357 = sbr.rel (%p1355) target = $region120
      $region119: #{tpu_custom_call.1} parent=5 // pred_region
        %s1358 = ssub.s32 %s32, 2
        // Predicated region
        $region121: #{tpu_custom_call.1} parent=119 // pred_check
          %p1359 = pneg %p465
        $region122: #{tpu_custom_call.1} parent=119 // pred_check_branch
          %1361 = sbr.rel (%p1359) target = $region124
        $region123: #{tpu_custom_call.1} parent=119 // pred_region
          %s1362 = sand.u32 %s450, 1
          %s1363 = scalar_lea.sflag [#allocation7], %s1362
          %s1364 = sand.u32 %s450, 1
          %s1365 = smul.addr %s1364, 8
          %s1366 = scalar_lea.vmem [#allocation13], %s1365
          %1368 = dma.done %s1363, 128
        $region124: #{tpu_custom_call.1} parent=119 // pred_fallthru
          _
      $region120: #{tpu_custom_call.1} parent=5 // pred_fallthru
        _
    $region6: #{tpu_custom_call.1} parent=1 // loop_footer
      %s36 = sadd.s32 1, %s32
    $region7: #{tpu_custom_call.1} parent=1 // loop_footer_branch
      %31 = sbr.rel target = $region3
    $region8: #{tpu_custom_call.1} parent=1 // loop_exit
      _
    %1369 = vsyncpa [#allocation6], 1
    %s1370 = scalar_lea.sflag [#allocation6], 1
    %1371 = vsyncpa %s1370, 1
    %1372 = vsyncpa [#allocation9], 1
    %1373 = vsyncpa [#allocation12], 1
    %1374 = vsyncpa [#allocation7], 1
    %s1375 = scalar_lea.sflag [#allocation7], 1
    %1376 = vsyncpa %s1375, 1

</llo_original>
